<compile_context>
chip_gen: v5e
topology: v5e:2x2
jax: 0.10.0
libtpu: 0.0.40
codegen_flags: <defaults>
</compile_context>

<pallas_src>
import functools

import jax
import jax.numpy as jnp
import numpy as np
from jax.experimental import pallas as pl
from jax.experimental.pallas import tpu as pltpu


# -----------------------------------------------------------------------------
# Pallas kernel: one grid step == one chunk of `steps_per_block` timesteps.
# LSTM hidden/cell states and the per-destination edge-state sum live in VMEM
# scratch and carry across the (serial, "arbitrary") grid axis.
# -----------------------------------------------------------------------------
def _graph_encoder_kernel(
    gate_pre_ref, pre_a_ref, pre_b_ref,
    agg_ref, w_hh_ref, w_eng_ref, w_lp_ref, b_lp_ref,
    w_edge_a_ref, w_edge_b_ref,
    out_ref,
    h_sc, c_sc, esum_sc,
    *, steps_per_block, hidden, pad_width):
  f32 = jnp.float32
  H = hidden

  @pl.when(pl.program_id(0) == 0)
  def _():
    h_sc[...] = jnp.zeros_like(h_sc)
    c_sc[...] = jnp.zeros_like(c_sc)
    esum_sc[...] = jnp.zeros_like(esum_sc)

  # Load weights once per chunk (hoisted above the unrolled time loop).
  agg = agg_ref[...]
  w_hh = w_hh_ref[...]
  w_eng = w_eng_ref[...]
  w_lp = w_lp_ref[...]
  b_lp = b_lp_ref[...]
  w_ea = w_edge_a_ref[...]
  w_eb = w_edge_b_ref[...]

  def mm(x, wm):
    return jnp.dot(x, wm, preferred_element_type=f32)

  h = h_sc[...]
  c = c_sc[...]
  esum = esum_sc[...]
  AB = h.shape[0]
  pad_block = jnp.zeros((AB, pad_width), f32) if pad_width else None

  # Small static inner loop over the time chunk (the recurrence is inherently serial);
  # amortizes the ~0.35us per-grid-step pipeline overhead across `steps_per_block` steps.
  for tl in range(steps_per_block):
    # All non-recurrent gate contributions (coord/type/scene/agent/biases, folded through
    # W_ih in the wrapper) arrive precomputed in gate_pre; only recurrent matmuls remain.
    gates = gate_pre_ref[tl] + mm(esum, w_eng) + mm(h, w_hh)
    sig = jax.nn.sigmoid(gates[:, :3 * H])     # gate columns reordered to [i|f|o|g] in wrapper
    g_g = jnp.tanh(gates[:, 3 * H:])
    c = sig[:, H:2 * H] * c + sig[:, :H] * g_g
    h = sig[:, 2 * H:3 * H] * jnp.tanh(c)

    res = jnp.maximum(mm(h, w_lp) + b_lp, 0.0)               # layer_pred (Linear + ReLU)

    # Edge update, decomposed:  edge(i,j) = bn*(P[i]+Q[j]+b_cross) for i!=j, self_edge on diag.
    # Only the per-destination SUM of edge states is ever consumed next step, so carry just it.
    p_src = mm(h, w_ea) + pre_a_ref[tl]                       # bn-scaled P, (AB, E)
    # TODO(synk): for large A, replace the dense agg matmul with a (B, A, E) reshape +
    # agent-axis sum (O(A*B*E) instead of O(A^2*B^2*E)); kept as a matmul for the toy A.
    esum = mm(agg, p_src) + mm(h, w_eb) + pre_b_ref[tl]

    pieces = [res, h, c]
    if pad_block is not None:
      pieces.append(pad_block)
    out_ref[tl] = jnp.concatenate(pieces, axis=-1)            # lane-dense slab store

  h_sc[...] = h
  c_sc[...] = c
  esum_sc[...] = esum


# -----------------------------------------------------------------------------
# Wrapper: layout transforms, weight folding / hoisted precompute, pallas_call.
# -----------------------------------------------------------------------------
def graph_encoder_forward(inputs, weights, *, time_chunk=8):
  # encoder_normalized_trajectory_only == False -> cat(normalized, raw) on dim 3
  both = jnp.concatenate(
      [inputs['normalized_trajectories'], inputs['trajectories']],
      axis=3).astype(jnp.float32)
  Bsz, A, T, F = both.shape
  Td = inputs['agent_type'].shape[-1]
  Ad = inputs['agent_data'].shape[-1]
  w = {k: v.astype(jnp.float32) for k, v in weights.items()}
  H = w['w_nt'].shape[1]
  E = w['w_en'].shape[0]
  O = w['w_lp'].shape[1]
  AB = A * Bsz

  # ---- layouts: time-major, agent-major-flattened rows (row = agent * B + b) ----
  traj_k = jnp.transpose(both, (2, 1, 0, 3)).reshape(T, AB, F)
  atype_k = jnp.transpose(inputs['agent_type'], (1, 0, 2)).astype(jnp.float32).reshape(AB, Td)
  scene_k = jnp.transpose(inputs['scene_data'], (1, 0, 2)).astype(jnp.float32)        # (T,B,Sd)
  adata_k = jnp.transpose(inputs['agent_data'], (2, 1, 0, 3)).astype(jnp.float32).reshape(T, AB, Ad)
  rel_k = jnp.transpose(inputs['relevant_agents'], (1, 0)).astype(jnp.float32).reshape(AB, 1)

  # ---- split concatenated-input linears (concat @ W == sum of per-block matmuls) ----
  wih = w['w_ih']                                      # (5H, 4H): [coord|type|edges|scene|agent]
  wih_c, wih_t, wih_e, wih_s, wih_a = (wih[i * H:(i + 1) * H] for i in range(5))
  b_gate = w['b_ih'] + w['b_hh']

  # ---- hoist every non-recurrent gate contribution out of the serial loop ----
  # Each is one large (T*AB, .) matmul done once by XLA, folded through W_ih.
  coord_g = jax.nn.relu(traj_k.reshape(T * AB, F) @ w['w_in'] + w['b_in']) @ wih_c    # (T*AB,4H)
  ntype_g = (atype_k @ w['w_nt'] + w['b_nt']) @ wih_t                                 # (AB, 4H)
  scene_g = (scene_k @ w['w_sc'] + w['b_sc']) @ wih_s                                 # (T, B, 4H)
  scene_rep = jnp.broadcast_to(scene_g[:, None], (T, A, Bsz, 4 * H)).reshape(T, AB, 4 * H)
  agent_g = (((adata_k @ w['w_ag']) + w['b_ag']) * rel_k) @ wih_a                     # (T, AB, 4H)
  edge_bias_g = float(A) * (w['b_en'] @ wih_e)                                        # (1, 4H), t>0
  tmask = (jnp.arange(T) > 0).astype(jnp.float32)[:, None, None]
  gate_pre = (coord_g.reshape(T, AB, 4 * H) + ntype_g[None] + scene_rep + agent_g
              + b_gate[None] + tmask * edge_bias_g[None])

  # edges->gates pass-through fold: (esum @ w_en + A*b_en) @ wih_e == esum @ (w_en@wih_e) + const
  w_en_g = w['w_en'] @ wih_e                                                          # (E, 4H)

  # Reorder gate columns (i,f,g,o) -> (i,f,o,g): one sigmoid on (AB,3H), one tanh on (AB,H).
  perm = np.concatenate([np.arange(2 * H), np.arange(3 * H, 4 * H), np.arange(2 * H, 3 * H)])
  gate_pre = gate_pre[..., perm]
  w_hh_k = w['w_hh'][:, perm]
  w_en_g = w_en_g[:, perm]

  # ---- edge-path precompute: everything that does not depend on h(t) ----
  wei = w['w_ei']                                      # (2F+2Td, E): [traj_i|type_i|traj_j|type_j]
  w_ei_ti, w_ei_ai = wei[0:F], wei[F:F + Td]
  w_ei_tj, w_ei_aj = wei[F + Td:2 * F + Td], wei[2 * F + Td:2 * F + 2 * Td]
  wet = w['w_et']                                      # (2Td, E): [type_i|type_j]
  w_et_i, w_et_j = wet[0:Td], wet[Td:2 * Td]
  wem = w['w_em']                                      # (2H+2E, E): [h_i|h_j|edge_input|edge_type]
  w_em_hi, w_em_hj = wem[0:H], wem[H:2 * H]
  w_em_e, w_em_t = wem[2 * H:2 * H + E], wem[2 * H + E:2 * H + 2 * E]
  wse = w['w_se']                                      # (H+E+Td, E): [h|edge_input|agent_type]
  w_se_h, w_se_e, w_se_t = wse[0:H], wse[H:H + E], wse[H + E:H + E + Td]
  b_cross = w['b_ei'] @ w_em_e + w['b_et'] @ w_em_t + w['b_em']    # (1, E)
  b_self = w['b_ei'] @ w_se_e + w['b_se']                          # (1, E)
  bn_scale = float(1.0 / np.sqrt(1.0 + 1e-5))   # BatchNorm1d eval, fresh running stats

  traj_flat = traj_k.reshape(T * AB, F)
  ei_i = (traj_flat @ w_ei_ti).reshape(T, AB, E) + (atype_k @ w_ei_ai)[None]
  ei_j = (traj_flat @ w_ei_tj).reshape(T, AB, E) + (atype_k @ w_ei_aj)[None]
  pre_p = ei_i @ w_em_e + (atype_k @ w_et_i @ w_em_t)[None]
  pre_q = ei_j @ w_em_e + (atype_k @ w_et_j @ w_em_t)[None]
  pre_self = (ei_i + ei_j) @ w_se_e + (atype_k @ w_se_t)[None] + b_self[None]

  # esum(dst) = agg @ p_src + h @ w_edge_b + pre_b, with p_src = bn*(h@w_em_hi) + pre_a.
  pre_a = bn_scale * pre_p
  pre_b = ((-bn_scale) * pre_p + (bn_scale * (A - 1)) * pre_q + pre_self
           + (bn_scale * (A - 1)) * b_cross[None])
  w_edge_a = bn_scale * w_em_hi
  # TODO(synk): when E is a multiple of 128 (v6e/v7x 256-wide MXU), pack [w_edge_a|w_edge_b]
  # into one (H, 2E) weight and slice the result; skipped for the toy E=16 (misaligned slices).
  w_edge_b = (-bn_scale) * w_em_hi + (bn_scale * (A - 1)) * w_em_hj + w_se_h

  # ---- time chunking (amortize per-grid-step pipeline overhead) ----
  Tc = T if T <= time_chunk else time_chunk
  Tp = ((T + Tc - 1) // Tc) * Tc
  if Tp != T:
    padcfg = ((0, Tp - T), (0, 0), (0, 0))
    gate_pre = jnp.pad(gate_pre, padcfg)
    pre_a = jnp.pad(pre_a, padcfg)
    pre_b = jnp.pad(pre_b, padcfg)

  # Constant per-destination source-sum matrix (sum over agents within each batch element).
  agg_mat = jnp.asarray(np.kron(np.ones((A, A), np.float32), np.eye(Bsz, dtype=np.float32)))

  # ---- lane-dense output slab [res | h | c | zero-pad], padded to a multiple of 128 lanes ----
  W = O + 2 * H
  W_pad = ((W + 127) // 128) * 128
  pad_width = W_pad - W

  def full_spec(shape):
    n = len(shape)
    return pl.BlockSpec(shape, lambda tc, _n=n: (0,) * _n)

  in_specs = [
      pl.BlockSpec((Tc, AB, 4 * H), lambda tc: (tc, 0, 0)),   # gate_pre
      pl.BlockSpec((Tc, AB, E), lambda tc: (tc, 0, 0)),       # pre_a
      pl.BlockSpec((Tc, AB, E), lambda tc: (tc, 0, 0)),       # pre_b
      full_spec((AB, AB)),                                    # agg
      full_spec((H, 4 * H)),                                  # w_hh
      full_spec((E, 4 * H)),                                  # w_en_g
      full_spec((H, O)),                                      # w_lp
      full_spec((1, O)),                                      # b_lp
      full_spec((H, E)),                                      # w_edge_a
      full_spec((H, E)),                                      # w_edge_b
  ]
  out_specs = pl.BlockSpec((Tc, AB, W_pad), lambda tc: (tc, 0, 0))
  out_shape = jax.ShapeDtypeStruct((Tp, AB, W_pad), jnp.float32)

  kernel = functools.partial(_graph_encoder_kernel, steps_per_block=Tc, hidden=H,
                             pad_width=pad_width)
  # TODO(synk): on v7x add a leading "parallel" grid axis over batch (batch-major row layout)
  # to use the second TensorCore; skipped here because the toy AB is below 8 sublanes.
  slab = pl.pallas_call(
      kernel,
      out_shape=out_shape,
      grid_spec=pltpu.PrefetchScalarGridSpec(
          num_scalar_prefetch=0,
          grid=(Tp // Tc,),
          in_specs=in_specs,
          out_specs=out_specs,
          scratch_shapes=[
              pltpu.VMEM((AB, H), jnp.float32),   # node hidden states (carried across chunks)
              pltpu.VMEM((AB, H), jnp.float32),   # node cell states
              pltpu.VMEM((AB, E), jnp.float32),   # per-destination sum of edge states
          ]),
      compiler_params=pltpu.CompilerParams(
          dimension_semantics=("arbitrary",)),    # time recurrence is inherently serial
  )(gate_pre, pre_a, pre_b, agg_mat, w_hh_k, w_en_g, w['w_lp'], w['b_lp'],
    w_edge_a, w_edge_b)

  slab = slab[:T]
  res = jnp.transpose(slab[..., :O].reshape(T, A, Bsz, O), (2, 1, 0, 3))   # (B, A, T, O)
  h_all = slab[..., O:O + H].reshape(T, A, Bsz, H)
  c_all = slab[..., O + H:O + 2 * H].reshape(T, A, Bsz, H)
  # node_states: time-major (T, A, B, H) h/c arrays (PyTorch returns nested lists of these).
  return res, (h_all, c_all), {}


# -----------------------------------------------------------------------------
# Deterministic parameter initialization (shapes from GraphEncoder.__init__);
# weights are stored pre-transposed as (in_features, out_features).
# -----------------------------------------------------------------------------
def init_weights(key, *, input_dim, node_hidden_dim, edge_hidden_dim,
                 output_dim, type_dim, scene_dim, agent_dim):
  F = 2 * (input_dim + 1)
  H, E, O, Td = node_hidden_dim, edge_hidden_dim, output_dim, type_dim
  lstm_in = H * 5  # coord + type + edges + scene + agent (multiplier = 5)
  shapes = {
      'w_in': (F, H), 'b_in': (1, H),                      # input_module
      'w_nt': (Td, H), 'b_nt': (1, H),                     # node_type_processor
      'w_sc': (scene_dim, H), 'b_sc': (1, H),              # scene_processor
      'w_ag': (agent_dim, H), 'b_ag': (1, H),              # agent_processor
      'w_ih': (lstm_in, 4 * H), 'b_ih': (1, 4 * H),        # temporal model (LSTM)
      'w_hh': (H, 4 * H), 'b_hh': (1, 4 * H),
      'w_en': (E, H), 'b_en': (1, H),                      # edge_to_node_module
      'w_ei': (2 * F + 2 * Td, E), 'b_ei': (1, E),         # edge_input_module
      'w_et': (2 * Td, E), 'b_et': (1, E),                 # edge_type_processor
      'w_em': (2 * H + 2 * E, E), 'b_em': (1, E),          # edge_module (Linear)
      'w_se': (H + E + Td, E), 'b_se': (1, E),             # self_edge_module
      'w_lp': (H, O), 'b_lp': (1, O),                      # layer_pred
  }
  weights = {}
  names = sorted(shapes.keys())
  keys = jax.random.split(key, len(names))
  for k, name in zip(keys, names):
    scale = 0.1 if name.startswith('w') else 0.01
    weights[name] = scale * jax.random.normal(k, shapes[name], dtype=jnp.float32)
  return weights


# -----------------------------------------------------------------------------
# Pure-JAX reference (mirrors the PyTorch forward in eval mode) for validation.
# -----------------------------------------------------------------------------
def reference_forward(inputs, weights):
  w = weights
  both = jnp.concatenate(
      [inputs['normalized_trajectories'], inputs['trajectories']], axis=3)
  B, A, T, _ = both.shape
  at = inputs['agent_type']
  scene = inputs['scene_data']
  ad = inputs['agent_data']
  rel = inputs['relevant_agents'].astype(jnp.float32)
  H = w['w_nt'].shape[1]
  E = w['w_en'].shape[0]

  def lin(x, wn, bn):
    return x @ w[wn] + w[bn]

  h = [jnp.zeros((B, H), jnp.float32) for _ in range(A)]
  c = [jnp.zeros((B, H), jnp.float32) for _ in range(A)]
  edge = {(i, j): jnp.zeros((B, E), jnp.float32) for i in range(A) for j in range(A)}
  bn_scale = float(1.0 / np.sqrt(1.0 + 1e-5))
  res = []
  for t in range(T):
    proc_scene = lin(scene[:, t, :], 'w_sc', 'b_sc')
    new_h, new_c = [], []
    for i in range(A):
      node_coord = jax.nn.relu(lin(both[:, i, t, :], 'w_in', 'b_in'))
      node_type = lin(at[:, i, :], 'w_nt', 'b_nt')
      proc_agent = lin(ad[:, i, t, :], 'w_ag', 'b_ag') * rel[:, i][:, None]
      if t == 0:
        edges_in = jnp.zeros((B, H), jnp.float32)
      else:
        edges_in = sum(lin(edge[(i1, i)], 'w_en', 'b_en') for i1 in range(A))
      x = jnp.concatenate([node_coord, node_type, edges_in, proc_scene, proc_agent], axis=1)
      gates = x @ w['w_ih'] + w['b_ih'] + h[i] @ w['w_hh'] + w['b_hh']
      i_g = jax.nn.sigmoid(gates[:, :H])
      f_g = jax.nn.sigmoid(gates[:, H:2 * H])
      g_g = jnp.tanh(gates[:, 2 * H:3 * H])
      o_g = jax.nn.sigmoid(gates[:, 3 * H:])
      c_new = f_g * c[i] + i_g * g_g
      h_new = o_g * jnp.tanh(c_new)
      new_h.append(h_new)
      new_c.append(c_new)
    h, c = new_h, new_c
    new_edge = {}
    for i in range(A):
      for j in range(A):
        einp = lin(jnp.concatenate(
            [both[:, i, t, :], at[:, i, :], both[:, j, t, :], at[:, j, :]], axis=1),
            'w_ei', 'b_ei')
        if i != j:
          eat = lin(jnp.concatenate([at[:, i, :], at[:, j, :]], axis=1), 'w_et', 'b_et')
          new_edge[(i, j)] = lin(jnp.concatenate([h[i], h[j], einp, eat], axis=1),
                                 'w_em', 'b_em') * bn_scale
        else:
          new_edge[(i, j)] = lin(jnp.concatenate([h[i], einp, at[:, i, :]], axis=1),
                                 'w_se', 'b_se')
    edge = new_edge
    res.append(jnp.stack([jax.nn.relu(lin(h[i], 'w_lp', 'b_lp')) for i in range(A)], axis=0))
  res = jnp.stack(res, axis=0)              # (T, A, B, O)
  return jnp.transpose(res, (2, 1, 0, 3))   # (B, A, T, O)


if __name__ == "__main__":
  B, A, T = 2, 3, 4
  input_dim, node_hidden, edge_hidden, out_dim = 2, 32, 16, 8
  type_dim, scene_dim, agent_dim = 3, 4, 4

  key = jax.random.PRNGKey(0)
  k_w, k1, k2, k3, k4, k5, k6 = jax.random.split(key, 7)
  weights = init_weights(k_w, input_dim=input_dim, node_hidden_dim=node_hidden,
                         edge_hidden_dim=edge_hidden, output_dim=out_dim,
                         type_dim=type_dim, scene_dim=scene_dim, agent_dim=agent_dim)

  inputs = {
      'trajectories': jax.random.normal(k1, (B, A, T, input_dim + 1), jnp.float32),
      'normalized_trajectories': jax.random.normal(k2, (B, A, T, input_dim + 1), jnp.float32),
      'agent_type': jax.random.normal(k3, (B, A, type_dim), jnp.float32),
      'scene_data': jax.random.normal(k4, (B, T, scene_dim), jnp.float32),
      'agent_data': jax.random.normal(k5, (B, A, T, agent_dim), jnp.float32),
      'relevant_agents': (jax.random.uniform(k6, (B, A)) > 0.3).astype(jnp.float32),
      'initial_state': None,
  }

  res, (h_all, c_all), _ = graph_encoder_forward(inputs, weights)
  jax.block_until_ready(res)
  jax.block_until_ready((h_all, c_all))

  ref = reference_forward(inputs, weights)
  if not np.allclose(np.asarray(res), np.asarray(ref), atol=2e-3, rtol=2e-3):
    raise AssertionError("Pallas kernel output does not match pure-JAX reference")

  print("KERNEL_OK")
</pallas_src>

<mosaic_0001>
module attributes {stable_mosaic.version = 11 : i64} {
  func.func @_graph_encoder_kernel(%arg0: i32, %arg1: memref<4x6x128xf32, #tpu.memory_space<vmem>>, %arg2: memref<4x6x16xf32, #tpu.memory_space<vmem>>, %arg3: memref<4x6x16xf32, #tpu.memory_space<vmem>>, %arg4: memref<6x6xf32, #tpu.memory_space<vmem>>, %arg5: memref<32x128xf32, #tpu.memory_space<vmem>>, %arg6: memref<16x128xf32, #tpu.memory_space<vmem>>, %arg7: memref<32x8xf32, #tpu.memory_space<vmem>>, %arg8: memref<1x8xf32, #tpu.memory_space<vmem>>, %arg9: memref<32x16xf32, #tpu.memory_space<vmem>>, %arg10: memref<32x16xf32, #tpu.memory_space<vmem>>, %arg11: memref<4x6x128xf32, #tpu.memory_space<vmem>>, %arg12: memref<6x32xf32, #tpu.memory_space<vmem>>, %arg13: memref<6x32xf32, #tpu.memory_space<vmem>>, %arg14: memref<6x16xf32, #tpu.memory_space<vmem>>) attributes {dimension_semantics = [#tpu.dimension_semantics<arbitrary>], iteration_bounds = array<i64: 1>, scalar_prefetch = 0 : i64, scratch_operands = 3 : i64, tpu.core_type = #tpu.core_type<tc>, window_params = [{transform_indices = @transform_0, window_bounds = array<i64: 4, 6, 128>}, {transform_indices = @transform_1, window_bounds = array<i64: 4, 6, 16>}, {transform_indices = @transform_2, window_bounds = array<i64: 4, 6, 16>}, {pipeline_mode = #tpu.pipeline_mode<synchronous>, transform_indices = @transform_3, window_bounds = array<i64: 6, 6>}, {pipeline_mode = #tpu.pipeline_mode<synchronous>, transform_indices = @transform_4, window_bounds = array<i64: 32, 128>}, {pipeline_mode = #tpu.pipeline_mode<synchronous>, transform_indices = @transform_5, window_bounds = array<i64: 16, 128>}, {pipeline_mode = #tpu.pipeline_mode<synchronous>, transform_indices = @transform_6, window_bounds = array<i64: 32, 8>}, {pipeline_mode = #tpu.pipeline_mode<synchronous>, transform_indices = @transform_7, window_bounds = array<i64: 1, 8>}, {pipeline_mode = #tpu.pipeline_mode<synchronous>, transform_indices = @transform_8, window_bounds = array<i64: 32, 16>}, {pipeline_mode = #tpu.pipeline_mode<synchronous>, transform_indices = @transform_9, window_bounds = array<i64: 32, 16>}, {transform_indices = @transform_10, window_bounds = array<i64: 4, 6, 128>}]} {
    %c0_i32 = arith.constant 0 : i32
    %0 = arith.cmpi eq, %arg0, %c0_i32 : i32
    %1 = arith.extui %0 : i1 to i32
    %c0_i32_0 = arith.constant 0 : i32
    %2 = arith.cmpi ne, %1, %c0_i32_0 : i32
    scf.if %2 {
      %cst_103 = arith.constant 0.000000e+00 : f32
      %181 = vector.broadcast %cst_103 : f32 to vector<6x32xf32>
      %c0_104 = arith.constant 0 : index
      %c0_105 = arith.constant 0 : index
      %182 = vector.load %arg12[%c0_104, %c0_105] : memref<6x32xf32, #tpu.memory_space<vmem>>, vector<6x32xf32>
      tpu.vector_store %arg12[%c0_104, %c0_105], %181 {strides = array<i32>} : memref<6x32xf32, #tpu.memory_space<vmem>>, vector<6x32xf32>,
      %cst_106 = arith.constant 0.000000e+00 : f32
      %183 = vector.broadcast %cst_106 : f32 to vector<6x32xf32>
      %c0_107 = arith.constant 0 : index
      %c0_108 = arith.constant 0 : index
      %184 = vector.load %arg13[%c0_107, %c0_108] : memref<6x32xf32, #tpu.memory_space<vmem>>, vector<6x32xf32>
      tpu.vector_store %arg13[%c0_107, %c0_108], %183 {strides = array<i32>} : memref<6x32xf32, #tpu.memory_space<vmem>>, vector<6x32xf32>,
      %cst_109 = arith.constant 0.000000e+00 : f32
      %185 = vector.broadcast %cst_109 : f32 to vector<6x16xf32>
      %c0_110 = arith.constant 0 : index
      %c0_111 = arith.constant 0 : index
      %186 = vector.load %arg14[%c0_110, %c0_111] : memref<6x16xf32, #tpu.memory_space<vmem>>, vector<6x16xf32>
      tpu.vector_store %arg14[%c0_110, %c0_111], %185 {strides = array<i32>} : memref<6x16xf32, #tpu.memory_space<vmem>>, vector<6x16xf32>,
    } else {
    }
    %c0 = arith.constant 0 : index
    %c0_1 = arith.constant 0 : index
    %3 = vector.load %arg4[%c0, %c0_1] : memref<6x6xf32, #tpu.memory_space<vmem>>, vector<6x6xf32>
    %c0_2 = arith.constant 0 : index
    %c0_3 = arith.constant 0 : index
    %4 = vector.load %arg5[%c0_2, %c0_3] : memref<32x128xf32, #tpu.memory_space<vmem>>, vector<32x128xf32>
    %c0_4 = arith.constant 0 : index
    %c0_5 = arith.constant 0 : index
    %5 = vector.load %arg6[%c0_4, %c0_5] : memref<16x128xf32, #tpu.memory_space<vmem>>, vector<16x128xf32>
    %c0_6 = arith.constant 0 : index
    %c0_7 = arith.constant 0 : index
    %6 = vector.load %arg7[%c0_6, %c0_7] : memref<32x8xf32, #tpu.memory_space<vmem>>, vector<32x8xf32>
    %c0_8 = arith.constant 0 : index
    %c0_9 = arith.constant 0 : index
    %7 = vector.load %arg8[%c0_8, %c0_9] : memref<1x8xf32, #tpu.memory_space<vmem>>, vector<1x8xf32>
    %c0_10 = arith.constant 0 : index
    %c0_11 = arith.constant 0 : index
    %8 = vector.load %arg9[%c0_10, %c0_11] : memref<32x16xf32, #tpu.memory_space<vmem>>, vector<32x16xf32>
    %c0_12 = arith.constant 0 : index
    %c0_13 = arith.constant 0 : index
    %9 = vector.load %arg10[%c0_12, %c0_13] : memref<32x16xf32, #tpu.memory_space<vmem>>, vector<32x16xf32>
    %c0_14 = arith.constant 0 : index
    %c0_15 = arith.constant 0 : index
    %10 = vector.load %arg12[%c0_14, %c0_15] : memref<6x32xf32, #tpu.memory_space<vmem>>, vector<6x32xf32>
    %c0_16 = arith.constant 0 : index
    %c0_17 = arith.constant 0 : index
    %11 = vector.load %arg13[%c0_16, %c0_17] : memref<6x32xf32, #tpu.memory_space<vmem>>, vector<6x32xf32>
    %c0_18 = arith.constant 0 : index
    %c0_19 = arith.constant 0 : index
    %12 = vector.load %arg14[%c0_18, %c0_19] : memref<6x16xf32, #tpu.memory_space<vmem>>, vector<6x16xf32>
    %cst = arith.constant 0.000000e+00 : f32
    %13 = vector.broadcast %cst : f32 to vector<6x56xf32>
    %c0_20 = arith.constant 0 : index
    %c0_21 = arith.constant 0 : index
    %c0_22 = arith.constant 0 : index
    %14 = vector.load %arg1[%c0_20, %c0_21, %c0_22] : memref<4x6x128xf32, #tpu.memory_space<vmem>>, vector<1x6x128xf32>
    %15 = vector.shape_cast %14 : vector<1x6x128xf32> to vector<6x128xf32>
    %cst_23 = arith.constant dense<0.000000e+00> : vector<6x128xf32>
    %16 = tpu.matmul %12, %5, %cst_23 {dimension_numbers = #tpu.dot_dimension_numbers<[1], [0], [0], [1], [0, 0, 1, 1], [], []>} : vector<6x16xf32>, vector<16x128xf32>, vector<6x128xf32> -> vector<6x128xf32>
    %17 = arith.addf %15, %16 : vector<6x128xf32>
    %cst_24 = arith.constant dense<0.000000e+00> : vector<6x128xf32>
    %18 = tpu.matmul %10, %4, %cst_24 {dimension_numbers = #tpu.dot_dimension_numbers<[1], [0], [0], [1], [0, 0, 1, 1], [], []>} : vector<6x32xf32>, vector<32x128xf32>, vector<6x128xf32> -> vector<6x128xf32>
    %19 = arith.addf %17, %18 : vector<6x128xf32>
    %20 = vector.extract_strided_slice %19 {offsets = [0, 0], sizes = [6, 96], strides = [1, 1]} : vector<6x128xf32> to vector<6x96xf32>
    %21 = arith.negf %20 : vector<6x96xf32>
    %22 = math.exp %21 : vector<6x96xf32>
    %cst_25 = arith.constant 1.000000e+00 : f32
    %23 = vector.broadcast %cst_25 : f32 to vector<6x96xf32>
    %24 = arith.addf %23, %22 : vector<6x96xf32>
    %25 = arith.divf %23, %24 : vector<6x96xf32>
    %26 = vector.extract_strided_slice %19 {offsets = [0, 96], sizes = [6, 32], strides = [1, 1]} : vector<6x128xf32> to vector<6x32xf32>
    %27 = math.tanh %26 : vector<6x32xf32>
    %28 = vector.extract_strided_slice %25 {offsets = [0, 32], sizes = [6, 32], strides = [1, 1]} : vector<6x96xf32> to vector<6x32xf32>
    %29 = arith.mulf %28, %11 : vector<6x32xf32>
    %30 = vector.extract_strided_slice %25 {offsets = [0, 0], sizes = [6, 32], strides = [1, 1]} : vector<6x96xf32> to vector<6x32xf32>
    %31 = arith.mulf %30, %27 : vector<6x32xf32>
    %32 = arith.addf %29, %31 : vector<6x32xf32>
    %33 = vector.extract_strided_slice %25 {offsets = [0, 64], sizes = [6, 32], strides = [1, 1]} : vector<6x96xf32> to vector<6x32xf32>
    %34 = math.tanh %32 : vector<6x32xf32>
    %35 = arith.mulf %33, %34 : vector<6x32xf32>
    %cst_26 = arith.constant dense<0.000000e+00> : vector<6x8xf32>
    %36 = tpu.matmul %35, %6, %cst_26 {dimension_numbers = #tpu.dot_dimension_numbers<[1], [0], [0], [1], [0, 0, 1, 1], [], []>} : vector<6x32xf32>, vector<32x8xf32>, vector<6x8xf32> -> vector<6x8xf32>
    %37 = vector.broadcast %7 : vector<1x8xf32> to vector<6x8xf32>
    %38 = arith.addf %36, %37 : vector<6x8xf32>
    %cst_27 = arith.constant 0.000000e+00 : f32
    %39 = vector.broadcast %cst_27 : f32 to vector<6x8xf32>
    %40 = arith.maximumf %38, %39 : vector<6x8xf32>
    %cst_28 = arith.constant dense<0.000000e+00> : vector<6x16xf32>
    %41 = tpu.matmul %35, %8, %cst_28 {dimension_numbers = #tpu.dot_dimension_numbers<[1], [0], [0], [1], [0, 0, 1, 1], [], []>} : vector<6x32xf32>, vector<32x16xf32>, vector<6x16xf32> -> vector<6x16xf32>
    %c0_29 = arith.constant 0 : index
    %c0_30 = arith.constant 0 : index
    %c0_31 = arith.constant 0 : index
    %42 = vector.load %arg2[%c0_29, %c0_30, %c0_31] : memref<4x6x16xf32, #tpu.memory_space<vmem>>, vector<1x6x16xf32>
    %43 = vector.shape_cast %42 : vector<1x6x16xf32> to vector<6x16xf32>
    %44 = arith.addf %41, %43 : vector<6x16xf32>
    %cst_32 = arith.constant dense<0.000000e+00> : vector<6x16xf32>
    %45 = tpu.matmul %3, %44, %cst_32 {dimension_numbers = #tpu.dot_dimension_numbers<[1], [0], [0], [1], [0, 0, 1, 1], [], []>} : vector<6x6xf32>, vector<6x16xf32>, vector<6x16xf32> -> vector<6x16xf32>
    %cst_33 = arith.constant dense<0.000000e+00> : vector<6x16xf32>
    %46 = tpu.matmul %35, %9, %cst_33 {dimension_numbers = #tpu.dot_dimension_numbers<[1], [0], [0], [1], [0, 0, 1, 1], [], []>} : vector<6x32xf32>, vector<32x16xf32>, vector<6x16xf32> -> vector<6x16xf32>
    %47 = arith.addf %45, %46 : vector<6x16xf32>
    %c0_34 = arith.constant 0 : index
    %c0_35 = arith.constant 0 : index
    %c0_36 = arith.constant 0 : index
    %48 = vector.load %arg3[%c0_34, %c0_35, %c0_36] : memref<4x6x16xf32, #tpu.memory_space<vmem>>, vector<1x6x16xf32>
    %49 = vector.shape_cast %48 : vector<1x6x16xf32> to vector<6x16xf32>
    %50 = arith.addf %47, %49 : vector<6x16xf32>
    %51 = tpu.concatenate %40, %35, %32, %13 in 1 : vector<6x8xf32>, vector<6x32xf32>, vector<6x32xf32>, vector<6x56xf32> -> vector<6x128xf32>
    %c0_37 = arith.constant 0 : index
    %c0_38 = arith.constant 0 : index
    %c0_39 = arith.constant 0 : index
    %52 = vector.load %arg11[%c0_37, %c0_38, %c0_39] : memref<4x6x128xf32, #tpu.memory_space<vmem>>, vector<1x6x128xf32>
    %53 = vector.shape_cast %52 : vector<1x6x128xf32> to vector<6x128xf32>
    %54 = vector.shape_cast %51 : vector<6x128xf32> to vector<1x6x128xf32>
    tpu.vector_store %arg11[%c0_37, %c0_38, %c0_39], %54 {strides = array<i32>} : memref<4x6x128xf32, #tpu.memory_space<vmem>>, vector<1x6x128xf32>,
    %c1 = arith.constant 1 : index
    %c0_40 = arith.constant 0 : index
    %c0_41 = arith.constant 0 : index
    %55 = vector.load %arg1[%c1, %c0_40, %c0_41] : memref<4x6x128xf32, #tpu.memory_space<vmem>>, vector<1x6x128xf32>
    %56 = vector.shape_cast %55 : vector<1x6x128xf32> to vector<6x128xf32>
    %cst_42 = arith.constant dense<0.000000e+00> : vector<6x128xf32>
    %57 = tpu.matmul %50, %5, %cst_42 {dimension_numbers = #tpu.dot_dimension_numbers<[1], [0], [0], [1], [0, 0, 1, 1], [], []>} : vector<6x16xf32>, vector<16x128xf32>, vector<6x128xf32> -> vector<6x128xf32>
    %58 = arith.addf %56, %57 : vector<6x128xf32>
    %cst_43 = arith.constant dense<0.000000e+00> : vector<6x128xf32>
    %59 = tpu.matmul %35, %4, %cst_43 {dimension_numbers = #tpu.dot_dimension_numbers<[1], [0], [0], [1], [0, 0, 1, 1], [], []>} : vector<6x32xf32>, vector<32x128xf32>, vector<6x128xf32> -> vector<6x128xf32>
    %60 = arith.addf %58, %59 : vector<6x128xf32>
    %61 = vector.extract_strided_slice %60 {offsets = [0, 0], sizes = [6, 96], strides = [1, 1]} : vector<6x128xf32> to vector<6x96xf32>
    %62 = arith.negf %61 : vector<6x96xf32>
    %63 = math.exp %62 : vector<6x96xf32>
    %cst_44 = arith.constant 1.000000e+00 : f32
    %64 = vector.broadcast %cst_44 : f32 to vector<6x96xf32>
    %65 = arith.addf %64, %63 : vector<6x96xf32>
    %66 = arith.divf %64, %65 : vector<6x96xf32>
    %67 = vector.extract_strided_slice %60 {offsets = [0, 96], sizes = [6, 32], strides = [1, 1]} : vector<6x128xf32> to vector<6x32xf32>
    %68 = math.tanh %67 : vector<6x32xf32>
    %69 = vector.extract_strided_slice %66 {offsets = [0, 32], sizes = [6, 32], strides = [1, 1]} : vector<6x96xf32> to vector<6x32xf32>
    %70 = arith.mulf %69, %32 : vector<6x32xf32>
    %71 = vector.extract_strided_slice %66 {offsets = [0, 0], sizes = [6, 32], strides = [1, 1]} : vector<6x96xf32> to vector<6x32xf32>
    %72 = arith.mulf %71, %68 : vector<6x32xf32>
    %73 = arith.addf %70, %72 : vector<6x32xf32>
    %74 = vector.extract_strided_slice %66 {offsets = [0, 64], sizes = [6, 32], strides = [1, 1]} : vector<6x96xf32> to vector<6x32xf32>
    %75 = math.tanh %73 : vector<6x32xf32>
    %76 = arith.mulf %74, %75 : vector<6x32xf32>
    %cst_45 = arith.constant dense<0.000000e+00> : vector<6x8xf32>
    %77 = tpu.matmul %76, %6, %cst_45 {dimension_numbers = #tpu.dot_dimension_numbers<[1], [0], [0], [1], [0, 0, 1, 1], [], []>} : vector<6x32xf32>, vector<32x8xf32>, vector<6x8xf32> -> vector<6x8xf32>
    %78 = vector.broadcast %7 : vector<1x8xf32> to vector<6x8xf32>
    %79 = arith.addf %77, %78 : vector<6x8xf32>
    %cst_46 = arith.constant 0.000000e+00 : f32
    %80 = vector.broadcast %cst_46 : f32 to vector<6x8xf32>
    %81 = arith.maximumf %79, %80 : vector<6x8xf32>
    %cst_47 = arith.constant dense<0.000000e+00> : vector<6x16xf32>
    %82 = tpu.matmul %76, %8, %cst_47 {dimension_numbers = #tpu.dot_dimension_numbers<[1], [0], [0], [1], [0, 0, 1, 1], [], []>} : vector<6x32xf32>, vector<32x16xf32>, vector<6x16xf32> -> vector<6x16xf32>
    %c1_48 = arith.constant 1 : index
    %c0_49 = arith.constant 0 : index
    %c0_50 = arith.constant 0 : index
    %83 = vector.load %arg2[%c1_48, %c0_49, %c0_50] : memref<4x6x16xf32, #tpu.memory_space<vmem>>, vector<1x6x16xf32>
    %84 = vector.shape_cast %83 : vector<1x6x16xf32> to vector<6x16xf32>
    %85 = arith.addf %82, %84 : vector<6x16xf32>
    %cst_51 = arith.constant dense<0.000000e+00> : vector<6x16xf32>
    %86 = tpu.matmul %3, %85, %cst_51 {dimension_numbers = #tpu.dot_dimension_numbers<[1], [0], [0], [1], [0, 0, 1, 1], [], []>} : vector<6x6xf32>, vector<6x16xf32>, vector<6x16xf32> -> vector<6x16xf32>
    %cst_52 = arith.constant dense<0.000000e+00> : vector<6x16xf32>
    %87 = tpu.matmul %76, %9, %cst_52 {dimension_numbers = #tpu.dot_dimension_numbers<[1], [0], [0], [1], [0, 0, 1, 1], [], []>} : vector<6x32xf32>, vector<32x16xf32>, vector<6x16xf32> -> vector<6x16xf32>
    %88 = arith.addf %86, %87 : vector<6x16xf32>
    %c1_53 = arith.constant 1 : index
    %c0_54 = arith.constant 0 : index
    %c0_55 = arith.constant 0 : index
    %89 = vector.load %arg3[%c1_53, %c0_54, %c0_55] : memref<4x6x16xf32, #tpu.memory_space<vmem>>, vector<1x6x16xf32>
    %90 = vector.shape_cast %89 : vector<1x6x16xf32> to vector<6x16xf32>
    %91 = arith.addf %88, %90 : vector<6x16xf32>
    %92 = tpu.concatenate %81, %76, %73, %13 in 1 : vector<6x8xf32>, vector<6x32xf32>, vector<6x32xf32>, vector<6x56xf32> -> vector<6x128xf32>
    %c1_56 = arith.constant 1 : index
    %c0_57 = arith.constant 0 : index
    %c0_58 = arith.constant 0 : index
    %93 = vector.load %arg11[%c1_56, %c0_57, %c0_58] : memref<4x6x128xf32, #tpu.memory_space<vmem>>, vector<1x6x128xf32>
    %94 = vector.shape_cast %93 : vector<1x6x128xf32> to vector<6x128xf32>
    %95 = vector.shape_cast %92 : vector<6x128xf32> to vector<1x6x128xf32>
    tpu.vector_store %arg11[%c1_56, %c0_57, %c0_58], %95 {strides = array<i32>} : memref<4x6x128xf32, #tpu.memory_space<vmem>>, vector<1x6x128xf32>,
    %c2 = arith.constant 2 : index
    %c0_59 = arith.constant 0 : index
    %c0_60 = arith.constant 0 : index
    %96 = vector.load %arg1[%c2, %c0_59, %c0_60] : memref<4x6x128xf32, #tpu.memory_space<vmem>>, vector<1x6x128xf32>
    %97 = vector.shape_cast %96 : vector<1x6x128xf32> to vector<6x128xf32>
    %cst_61 = arith.constant dense<0.000000e+00> : vector<6x128xf32>
    %98 = tpu.matmul %91, %5, %cst_61 {dimension_numbers = #tpu.dot_dimension_numbers<[1], [0], [0], [1], [0, 0, 1, 1], [], []>} : vector<6x16xf32>, vector<16x128xf32>, vector<6x128xf32> -> vector<6x128xf32>
    %99 = arith.addf %97, %98 : vector<6x128xf32>
    %cst_62 = arith.constant dense<0.000000e+00> : vector<6x128xf32>
    %100 = tpu.matmul %76, %4, %cst_62 {dimension_numbers = #tpu.dot_dimension_numbers<[1], [0], [0], [1], [0, 0, 1, 1], [], []>} : vector<6x32xf32>, vector<32x128xf32>, vector<6x128xf32> -> vector<6x128xf32>
    %101 = arith.addf %99, %100 : vector<6x128xf32>
    %102 = vector.extract_strided_slice %101 {offsets = [0, 0], sizes = [6, 96], strides = [1, 1]} : vector<6x128xf32> to vector<6x96xf32>
    %103 = arith.negf %102 : vector<6x96xf32>
    %104 = math.exp %103 : vector<6x96xf32>
    %cst_63 = arith.constant 1.000000e+00 : f32
    %105 = vector.broadcast %cst_63 : f32 to vector<6x96xf32>
    %106 = arith.addf %105, %104 : vector<6x96xf32>
    %107 = arith.divf %105, %106 : vector<6x96xf32>
    %108 = vector.extract_strided_slice %101 {offsets = [0, 96], sizes = [6, 32], strides = [1, 1]} : vector<6x128xf32> to vector<6x32xf32>
    %109 = math.tanh %108 : vector<6x32xf32>
    %110 = vector.extract_strided_slice %107 {offsets = [0, 32], sizes = [6, 32], strides = [1, 1]} : vector<6x96xf32> to vector<6x32xf32>
    %111 = arith.mulf %110, %73 : vector<6x32xf32>
    %112 = vector.extract_strided_slice %107 {offsets = [0, 0], sizes = [6, 32], strides = [1, 1]} : vector<6x96xf32> to vector<6x32xf32>
    %113 = arith.mulf %112, %109 : vector<6x32xf32>
    %114 = arith.addf %111, %113 : vector<6x32xf32>
    %115 = vector.extract_strided_slice %107 {offsets = [0, 64], sizes = [6, 32], strides = [1, 1]} : vector<6x96xf32> to vector<6x32xf32>
    %116 = math.tanh %114 : vector<6x32xf32>
    %117 = arith.mulf %115, %116 : vector<6x32xf32>
    %cst_64 = arith.constant dense<0.000000e+00> : vector<6x8xf32>
    %118 = tpu.matmul %117, %6, %cst_64 {dimension_numbers = #tpu.dot_dimension_numbers<[1], [0], [0], [1], [0, 0, 1, 1], [], []>} : vector<6x32xf32>, vector<32x8xf32>, vector<6x8xf32> -> vector<6x8xf32>
    %119 = vector.broadcast %7 : vector<1x8xf32> to vector<6x8xf32>
    %120 = arith.addf %118, %119 : vector<6x8xf32>
    %cst_65 = arith.constant 0.000000e+00 : f32
    %121 = vector.broadcast %cst_65 : f32 to vector<6x8xf32>
    %122 = arith.maximumf %120, %121 : vector<6x8xf32>
    %cst_66 = arith.constant dense<0.000000e+00> : vector<6x16xf32>
    %123 = tpu.matmul %117, %8, %cst_66 {dimension_numbers = #tpu.dot_dimension_numbers<[1], [0], [0], [1], [0, 0, 1, 1], [], []>} : vector<6x32xf32>, vector<32x16xf32>, vector<6x16xf32> -> vector<6x16xf32>
    %c2_67 = arith.constant 2 : index
    %c0_68 = arith.constant 0 : index
    %c0_69 = arith.constant 0 : index
    %124 = vector.load %arg2[%c2_67, %c0_68, %c0_69] : memref<4x6x16xf32, #tpu.memory_space<vmem>>, vector<1x6x16xf32>
    %125 = vector.shape_cast %124 : vector<1x6x16xf32> to vector<6x16xf32>
    %126 = arith.addf %123, %125 : vector<6x16xf32>
    %cst_70 = arith.constant dense<0.000000e+00> : vector<6x16xf32>
    %127 = tpu.matmul %3, %126, %cst_70 {dimension_numbers = #tpu.dot_dimension_numbers<[1], [0], [0], [1], [0, 0, 1, 1], [], []>} : vector<6x6xf32>, vector<6x16xf32>, vector<6x16xf32> -> vector<6x16xf32>
    %cst_71 = arith.constant dense<0.000000e+00> : vector<6x16xf32>
    %128 = tpu.matmul %117, %9, %cst_71 {dimension_numbers = #tpu.dot_dimension_numbers<[1], [0], [0], [1], [0, 0, 1, 1], [], []>} : vector<6x32xf32>, vector<32x16xf32>, vector<6x16xf32> -> vector<6x16xf32>
    %129 = arith.addf %127, %128 : vector<6x16xf32>
    %c2_72 = arith.constant 2 : index
    %c0_73 = arith.constant 0 : index
    %c0_74 = arith.constant 0 : index
    %130 = vector.load %arg3[%c2_72, %c0_73, %c0_74] : memref<4x6x16xf32, #tpu.memory_space<vmem>>, vector<1x6x16xf32>
    %131 = vector.shape_cast %130 : vector<1x6x16xf32> to vector<6x16xf32>
    %132 = arith.addf %129, %131 : vector<6x16xf32>
    %133 = tpu.concatenate %122, %117, %114, %13 in 1 : vector<6x8xf32>, vector<6x32xf32>, vector<6x32xf32>, vector<6x56xf32> -> vector<6x128xf32>
    %c2_75 = arith.constant 2 : index
    %c0_76 = arith.constant 0 : index
    %c0_77 = arith.constant 0 : index
    %134 = vector.load %arg11[%c2_75, %c0_76, %c0_77] : memref<4x6x128xf32, #tpu.memory_space<vmem>>, vector<1x6x128xf32>
    %135 = vector.shape_cast %134 : vector<1x6x128xf32> to vector<6x128xf32>
    %136 = vector.shape_cast %133 : vector<6x128xf32> to vector<1x6x128xf32>
    tpu.vector_store %arg11[%c2_75, %c0_76, %c0_77], %136 {strides = array<i32>} : memref<4x6x128xf32, #tpu.memory_space<vmem>>, vector<1x6x128xf32>,
    %c3 = arith.constant 3 : index
    %c0_78 = arith.constant 0 : index
    %c0_79 = arith.constant 0 : index
    %137 = vector.load %arg1[%c3, %c0_78, %c0_79] : memref<4x6x128xf32, #tpu.memory_space<vmem>>, vector<1x6x128xf32>
    %138 = vector.shape_cast %137 : vector<1x6x128xf32> to vector<6x128xf32>
    %cst_80 = arith.constant dense<0.000000e+00> : vector<6x128xf32>
    %139 = tpu.matmul %132, %5, %cst_80 {dimension_numbers = #tpu.dot_dimension_numbers<[1], [0], [0], [1], [0, 0, 1, 1], [], []>} : vector<6x16xf32>, vector<16x128xf32>, vector<6x128xf32> -> vector<6x128xf32>
    %140 = arith.addf %138, %139 : vector<6x128xf32>
    %cst_81 = arith.constant dense<0.000000e+00> : vector<6x128xf32>
    %141 = tpu.matmul %117, %4, %cst_81 {dimension_numbers = #tpu.dot_dimension_numbers<[1], [0], [0], [1], [0, 0, 1, 1], [], []>} : vector<6x32xf32>, vector<32x128xf32>, vector<6x128xf32> -> vector<6x128xf32>
    %142 = arith.addf %140, %141 : vector<6x128xf32>
    %143 = vector.extract_strided_slice %142 {offsets = [0, 0], sizes = [6, 96], strides = [1, 1]} : vector<6x128xf32> to vector<6x96xf32>
    %144 = arith.negf %143 : vector<6x96xf32>
    %145 = math.exp %144 : vector<6x96xf32>
    %cst_82 = arith.constant 1.000000e+00 : f32
    %146 = vector.broadcast %cst_82 : f32 to vector<6x96xf32>
    %147 = arith.addf %146, %145 : vector<6x96xf32>
    %148 = arith.divf %146, %147 : vector<6x96xf32>
    %149 = vector.extract_strided_slice %142 {offsets = [0, 96], sizes = [6, 32], strides = [1, 1]} : vector<6x128xf32> to vector<6x32xf32>
    %150 = math.tanh %149 : vector<6x32xf32>
    %151 = vector.extract_strided_slice %148 {offsets = [0, 32], sizes = [6, 32], strides = [1, 1]} : vector<6x96xf32> to vector<6x32xf32>
    %152 = arith.mulf %151, %114 : vector<6x32xf32>
    %153 = vector.extract_strided_slice %148 {offsets = [0, 0], sizes = [6, 32], strides = [1, 1]} : vector<6x96xf32> to vector<6x32xf32>
    %154 = arith.mulf %153, %150 : vector<6x32xf32>
    %155 = arith.addf %152, %154 : vector<6x32xf32>
    %156 = vector.extract_strided_slice %148 {offsets = [0, 64], sizes = [6, 32], strides = [1, 1]} : vector<6x96xf32> to vector<6x32xf32>
    %157 = math.tanh %155 : vector<6x32xf32>
    %158 = arith.mulf %156, %157 : vector<6x32xf32>
    %cst_83 = arith.constant dense<0.000000e+00> : vector<6x8xf32>
    %159 = tpu.matmul %158, %6, %cst_83 {dimension_numbers = #tpu.dot_dimension_numbers<[1], [0], [0], [1], [0, 0, 1, 1], [], []>} : vector<6x32xf32>, vector<32x8xf32>, vector<6x8xf32> -> vector<6x8xf32>
    %160 = vector.broadcast %7 : vector<1x8xf32> to vector<6x8xf32>
    %161 = arith.addf %159, %160 : vector<6x8xf32>
    %cst_84 = arith.constant 0.000000e+00 : f32
    %162 = vector.broadcast %cst_84 : f32 to vector<6x8xf32>
    %163 = arith.maximumf %161, %162 : vector<6x8xf32>
    %cst_85 = arith.constant dense<0.000000e+00> : vector<6x16xf32>
    %164 = tpu.matmul %158, %8, %cst_85 {dimension_numbers = #tpu.dot_dimension_numbers<[1], [0], [0], [1], [0, 0, 1, 1], [], []>} : vector<6x32xf32>, vector<32x16xf32>, vector<6x16xf32> -> vector<6x16xf32>
    %c3_86 = arith.constant 3 : index
    %c0_87 = arith.constant 0 : index
    %c0_88 = arith.constant 0 : index
    %165 = vector.load %arg2[%c3_86, %c0_87, %c0_88] : memref<4x6x16xf32, #tpu.memory_space<vmem>>, vector<1x6x16xf32>
    %166 = vector.shape_cast %165 : vector<1x6x16xf32> to vector<6x16xf32>
    %167 = arith.addf %164, %166 : vector<6x16xf32>
    %cst_89 = arith.constant dense<0.000000e+00> : vector<6x16xf32>
    %168 = tpu.matmul %3, %167, %cst_89 {dimension_numbers = #tpu.dot_dimension_numbers<[1], [0], [0], [1], [0, 0, 1, 1], [], []>} : vector<6x6xf32>, vector<6x16xf32>, vector<6x16xf32> -> vector<6x16xf32>
    %cst_90 = arith.constant dense<0.000000e+00> : vector<6x16xf32>
    %169 = tpu.matmul %158, %9, %cst_90 {dimension_numbers = #tpu.dot_dimension_numbers<[1], [0], [0], [1], [0, 0, 1, 1], [], []>} : vector<6x32xf32>, vector<32x16xf32>, vector<6x16xf32> -> vector<6x16xf32>
    %170 = arith.addf %168, %169 : vector<6x16xf32>
    %c3_91 = arith.constant 3 : index
    %c0_92 = arith.constant 0 : index
    %c0_93 = arith.constant 0 : index
    %171 = vector.load %arg3[%c3_91, %c0_92, %c0_93] : memref<4x6x16xf32, #tpu.memory_space<vmem>>, vector<1x6x16xf32>
    %172 = vector.shape_cast %171 : vector<1x6x16xf32> to vector<6x16xf32>
    %173 = arith.addf %170, %172 : vector<6x16xf32>
    %174 = tpu.concatenate %163, %158, %155, %13 in 1 : vector<6x8xf32>, vector<6x32xf32>, vector<6x32xf32>, vector<6x56xf32> -> vector<6x128xf32>
    %c3_94 = arith.constant 3 : index
    %c0_95 = arith.constant 0 : index
    %c0_96 = arith.constant 0 : index
    %175 = vector.load %arg11[%c3_94, %c0_95, %c0_96] : memref<4x6x128xf32, #tpu.memory_space<vmem>>, vector<1x6x128xf32>
    %176 = vector.shape_cast %175 : vector<1x6x128xf32> to vector<6x128xf32>
    %177 = vector.shape_cast %174 : vector<6x128xf32> to vector<1x6x128xf32>
    tpu.vector_store %arg11[%c3_94, %c0_95, %c0_96], %177 {strides = array<i32>} : memref<4x6x128xf32, #tpu.memory_space<vmem>>, vector<1x6x128xf32>,
    %c0_97 = arith.constant 0 : index
    %c0_98 = arith.constant 0 : index
    %178 = vector.load %arg12[%c0_97, %c0_98] : memref<6x32xf32, #tpu.memory_space<vmem>>, vector<6x32xf32>
    tpu.vector_store %arg12[%c0_97, %c0_98], %158 {strides = array<i32>} : memref<6x32xf32, #tpu.memory_space<vmem>>, vector<6x32xf32>,
    %c0_99 = arith.constant 0 : index
    %c0_100 = arith.constant 0 : index
    %179 = vector.load %arg13[%c0_99, %c0_100] : memref<6x32xf32, #tpu.memory_space<vmem>>, vector<6x32xf32>
    tpu.vector_store %arg13[%c0_99, %c0_100], %155 {strides = array<i32>} : memref<6x32xf32, #tpu.memory_space<vmem>>, vector<6x32xf32>,
    %c0_101 = arith.constant 0 : index
    %c0_102 = arith.constant 0 : index
    %180 = vector.load %arg14[%c0_101, %c0_102] : memref<6x16xf32, #tpu.memory_space<vmem>>, vector<6x16xf32>
    tpu.vector_store %arg14[%c0_101, %c0_102], %173 {strides = array<i32>} : memref<6x16xf32, #tpu.memory_space<vmem>>, vector<6x16xf32>,
    return
  }
  func.func @transform_0(%arg0: i32) -> (i32, i32, i32) {
    %c0_i32 = arith.constant 0 : i32
    %c0_i32_0 = arith.constant 0 : i32
    %c0_i32_1 = arith.constant 0 : i32
    return %arg0, %c0_i32, %c0_i32_0 : i32, i32, i32
  }
  func.func @transform_1(%arg0: i32) -> (i32, i32, i32) {
    %c0_i32 = arith.constant 0 : i32
    %c0_i32_0 = arith.constant 0 : i32
    %c0_i32_1 = arith.constant 0 : i32
    return %arg0, %c0_i32, %c0_i32_0 : i32, i32, i32
  }
  func.func @transform_2(%arg0: i32) -> (i32, i32, i32) {
    %c0_i32 = arith.constant 0 : i32
    %c0_i32_0 = arith.constant 0 : i32
    %c0_i32_1 = arith.constant 0 : i32
    return %arg0, %c0_i32, %c0_i32_0 : i32, i32, i32
  }
  func.func @transform_3(%arg0: i32) -> (i32, i32) {
    %c0_i32 = arith.constant 0 : i32
    %c0_i32_0 = arith.constant 0 : i32
    %c0_i32_1 = arith.constant 0 : i32
    return %c0_i32, %c0_i32_0 : i32, i32
  }
  func.func @transform_4(%arg0: i32) -> (i32, i32) {
    %c0_i32 = arith.constant 0 : i32
    %c0_i32_0 = arith.constant 0 : i32
    %c0_i32_1 = arith.constant 0 : i32
    return %c0_i32, %c0_i32_0 : i32, i32
  }
  func.func @transform_5(%arg0: i32) -> (i32, i32) {
    %c0_i32 = arith.constant 0 : i32
    %c0_i32_0 = arith.constant 0 : i32
    %c0_i32_1 = arith.constant 0 : i32
    return %c0_i32, %c0_i32_0 : i32, i32
  }
  func.func @transform_6(%arg0: i32) -> (i32, i32) {
    %c0_i32 = arith.constant 0 : i32
    %c0_i32_0 = arith.constant 0 : i32
    %c0_i32_1 = arith.constant 0 : i32
    return %c0_i32, %c0_i32_0 : i32, i32
  }
  func.func @transform_7(%arg0: i32) -> (i32, i32) {
    %c0_i32 = arith.constant 0 : i32
    %c0_i32_0 = arith.constant 0 : i32
    %c0_i32_1 = arith.constant 0 : i32
    return %c0_i32, %c0_i32_0 : i32, i32
  }
  func.func @transform_8(%arg0: i32) -> (i32, i32) {
    %c0_i32 = arith.constant 0 : i32
    %c0_i32_0 = arith.constant 0 : i32
    %c0_i32_1 = arith.constant 0 : i32
    return %c0_i32, %c0_i32_0 : i32, i32
  }
  func.func @transform_9(%arg0: i32) -> (i32, i32) {
    %c0_i32 = arith.constant 0 : i32
    %c0_i32_0 = arith.constant 0 : i32
    %c0_i32_1 = arith.constant 0 : i32
    return %c0_i32, %c0_i32_0 : i32, i32
  }
  func.func @transform_10(%arg0: i32) -> (i32, i32, i32) {
    %c0_i32 = arith.constant 0 : i32
    %c0_i32_0 = arith.constant 0 : i32
    %c0_i32_1 = arith.constant 0 : i32
    return %arg0, %c0_i32, %c0_i32_0 : i32, i32, i32
  }
}

</mosaic_0001>

<llo_original>
// kernel: tpu_custom_call.1
$region0: #{tpu_custom_call.1}
  #allocation0 [shape = 'u32[]', space=smem, size = 0x4, offset = 0x4, fixed_abs, tag = 'smem constant byte address 0x4 - core index']
  #allocation1 [shape = 'u32[72,128]{1,0:T(1,128)}', space=vmem, size = 0x9000, scoped, tag = 'internal scratch']
  #allocation2 [shape = 'f32[6,32]{1,0:T(8,128)}', space=vmem, size = 0x1000, scoped, tag = 'scratch operand']
  #allocation3 [shape = 'f32[6,32]{1,0:T(8,128)}', space=vmem, size = 0x1000, scoped, tag = 'scratch operand']
  #allocation4 [shape = 'f32[6,16]{1,0:T(8,128)}', space=vmem, size = 0x1000, scoped, tag = 'scratch operand']
  %s0 = inlined_call_operand.vmem [shape: f32[4,6,128], index: 0, kind: input, shape index: {}]
  %s1 = inlined_call_operand.vmem [shape: f32[4,6,16], index: 1, kind: input, shape index: {}]
  %s2 = inlined_call_operand.vmem [shape: f32[4,6,16], index: 2, kind: input, shape index: {}]
  %s3 = inlined_call_operand.vmem [shape: f32[6,6], index: 3, kind: input, shape index: {}]
  %s4 = inlined_call_operand.vmem [shape: f32[32,128], index: 4, kind: input, shape index: {}]
  %s5 = inlined_call_operand.vmem [shape: f32[16,128], index: 5, kind: input, shape index: {}]
  %s6 = inlined_call_operand.vmem [shape: f32[32,8], index: 6, kind: input, shape index: {}]
  %s7 = inlined_call_operand.vmem [shape: f32[1,8], index: 7, kind: input, shape index: {}]
  %s8 = inlined_call_operand.vmem [shape: f32[32,16], index: 8, kind: input, shape index: {}]
  %s9 = inlined_call_operand.vmem [shape: f32[32,16], index: 9, kind: input, shape index: {}]
  %s10 = inlined_call_operand.vmem [shape: f32[4,6,128], index: 10, kind: output, shape index: {}]
  %s11 = sld [smem:[#allocation0]]
  $region54: #{tpu_custom_call.1} parent=0
    _
  %s13 = ssub.s32 1, %s11
  %s14 = scalar_select 0, %s13, %s11
  // Predicated region
  $region2: #{tpu_custom_call.1} parent=0 // pred_check
    _
  $region3: #{tpu_custom_call.1} parent=0 // pred_check_branch
    %16 = sbr.rel (0) target = $region5
  $region4: #{tpu_custom_call.1} parent=0 // pred_region
    _
  $region5: #{tpu_custom_call.1} parent=0 // pred_fallthru
    _
  // Predicated region
  $region6: #{tpu_custom_call.1} parent=0 // pred_check
    _
  $region7: #{tpu_custom_call.1} parent=0 // pred_check_branch
    %18 = sbr.rel (0) target = $region9
  $region8: #{tpu_custom_call.1} parent=0 // pred_region
    _
  $region9: #{tpu_custom_call.1} parent=0 // pred_fallthru
    _
  // Predicated region
  $region10: #{tpu_custom_call.1} parent=0 // pred_check
    _
  $region11: #{tpu_custom_call.1} parent=0 // pred_check_branch
    %20 = sbr.rel (0) target = $region13
  $region12: #{tpu_custom_call.1} parent=0 // pred_region
    _
  $region13: #{tpu_custom_call.1} parent=0 // pred_fallthru
    _
  // Predicated region
  $region14: #{tpu_custom_call.1} parent=0 // pred_check
    _
  $region15: #{tpu_custom_call.1} parent=0 // pred_check_branch
    %22 = sbr.rel (0) target = $region17
  $region16: #{tpu_custom_call.1} parent=0 // pred_region
    _
  $region17: #{tpu_custom_call.1} parent=0 // pred_fallthru
    _
  // Predicated region
  $region18: #{tpu_custom_call.1} parent=0 // pred_check
    _
  $region19: #{tpu_custom_call.1} parent=0 // pred_check_branch
    %24 = sbr.rel (0) target = $region21
  $region20: #{tpu_custom_call.1} parent=0 // pred_region
    _
  $region21: #{tpu_custom_call.1} parent=0 // pred_fallthru
    _
  // Predicated region
  $region22: #{tpu_custom_call.1} parent=0 // pred_check
    _
  $region23: #{tpu_custom_call.1} parent=0 // pred_check_branch
    %26 = sbr.rel (0) target = $region25
  $region24: #{tpu_custom_call.1} parent=0 // pred_region
    _
  $region25: #{tpu_custom_call.1} parent=0 // pred_fallthru
    _
  // Predicated region
  $region26: #{tpu_custom_call.1} parent=0 // pred_check
    _
  $region27: #{tpu_custom_call.1} parent=0 // pred_check_branch
    %28 = sbr.rel (0) target = $region29
  $region28: #{tpu_custom_call.1} parent=0 // pred_region
    _
  $region29: #{tpu_custom_call.1} parent=0 // pred_fallthru
    _
  // Predicated region
  $region30: #{tpu_custom_call.1} parent=0 // pred_check
    _
  $region31: #{tpu_custom_call.1} parent=0 // pred_check_branch
    %30 = sbr.rel (0) target = $region33
  $region32: #{tpu_custom_call.1} parent=0 // pred_region
    _
  $region33: #{tpu_custom_call.1} parent=0 // pred_fallthru
    _
  // Predicated region
  $region34: #{tpu_custom_call.1} parent=0 // pred_check
    _
  $region35: #{tpu_custom_call.1} parent=0 // pred_check_branch
    %32 = sbr.rel (0) target = $region37
  $region36: #{tpu_custom_call.1} parent=0 // pred_region
    _
  $region37: #{tpu_custom_call.1} parent=0 // pred_fallthru
    _
  // Predicated region
  $region38: #{tpu_custom_call.1} parent=0 // pred_check
    _
  $region39: #{tpu_custom_call.1} parent=0 // pred_check_branch
    %34 = sbr.rel (0) target = $region41
  $region40: #{tpu_custom_call.1} parent=0 // pred_region
    _
  $region41: #{tpu_custom_call.1} parent=0 // pred_fallthru
    _
  %p35 = scmp.eq.s32.totalorder 0, 0
  // Predicated region
  $region42: #{tpu_custom_call.1} parent=0 // pred_check
    %p36 = pneg %p35
  $region43: #{tpu_custom_call.1} parent=0 // pred_check_branch
    %38 = sbr.rel (%p36) target = $region45
  $region44: #{tpu_custom_call.1} parent=0 // pred_region
    %vm39 = vcmask 259072
    %40 = vst.msk [vmem:[#allocation2] sm:$0x3f] %vm39, 0.0
    %41 = vst.msk [vmem:[#allocation3] sm:$0x3f] %vm39, 0.0
    %vm42 = vcmask 128000
    %43 = vst.msk [vmem:[#allocation4] sm:$0x3f] %vm42, 0.0
  $region45: #{tpu_custom_call.1} parent=0 // pred_fallthru
    _
  %v44 = vld [vmem:[%s3] sm:$0x3f]
  %v45 = vld [vmem:[%s4] sm:$0xff]
  %v46 = vld [vmem:[%s4 + $0x8] sm:$0xff]
  %v47 = vld [vmem:[%s4 + $0x10] sm:$0xff]
  %v48 = vld [vmem:[%s4 + $0x18] sm:$0xff]
  %v49 = vld [vmem:[%s5] sm:$0xff]
  %v50 = vld [vmem:[%s5 + $0x8] sm:$0xff]
  %v51 = vld [vmem:[%s6] sm:$0xff]
  %v52 = vld [vmem:[%s6 + $0x8] sm:$0xff]
  %v53 = vld [vmem:[%s6 + $0x10] sm:$0xff]
  %v54 = vld [vmem:[%s6 + $0x18] sm:$0xff]
  %v55 = vld [vmem:[%s7] sm:$0x1]
  %v56 = vld [vmem:[%s8] sm:$0xff]
  %v57 = vld [vmem:[%s8 + $0x8] sm:$0xff]
  %v58 = vld [vmem:[%s8 + $0x10] sm:$0xff]
  %v59 = vld [vmem:[%s8 + $0x18] sm:$0xff]
  %v60 = vld [vmem:[%s9] sm:$0xff]
  %v61 = vld [vmem:[%s9 + $0x8] sm:$0xff]
  %v62 = vld [vmem:[%s9 + $0x10] sm:$0xff]
  %v63 = vld [vmem:[%s9 + $0x18] sm:$0xff]
  %v64 = vld [vmem:[#allocation2] sm:$0x3f]
  %v65 = vld [vmem:[#allocation3] sm:$0x3f]
  %v66 = vld [vmem:[#allocation4] sm:$0x3f]
  %v67 = vld [vmem:[%s0] sm:$0x3f]
  %vm68 = vcmask 130048
  %v70 = vsel %vm68, %v66, 0
  %72 = vmatpush.msra.mxu0 0.0
  %73 = vmatpush.msra.mxu0 0.0
  %74 = vmatpush.msra.mxu0 0.0
  %75 = vmatpush.msra.mxu0 0.0
  %76 = vmatpush.msra.mxu0 0.0
  %77 = vmatpush.msra.mxu0 0.0
  %78 = vmatpush.msra.mxu0 0.0
  %79 = vmatpush.msra.mxu0 0.0
  %80 = vmatpush.msra.mxu0 0.0
  %81 = vmatpush.msra.mxu0 0.0
  %82 = vmatpush.msra.mxu0 0.0
  %83 = vmatpush.msra.mxu0 0.0
  %84 = vmatpush.msra.mxu0 0.0
  %85 = vmatpush.msra.mxu0 0.0
  %86 = vmatpush.msra.mxu0 %v50
  %87 = vmatpush.msra.mxu0 %v49
  %88 = vmatmul.f32.gmra.mxu0 %v70
  %v89 = vpop.f32.mrf.mxu0
  %v90 = vadd.f32 0.0, %v89
  %91 = vdwg.mxu0
  %v92 = vadd.f32 %v67, %v90
  %vm93 = vcmask 261120
  %v95 = vsel %vm93, %v64, 0
  %97 = vmatpush.msra.mxu0 0.0
  %98 = vmatpush.msra.mxu0 0.0
  %99 = vmatpush.msra.mxu0 0.0
  %100 = vmatpush.msra.mxu0 0.0
  %101 = vmatpush.msra.mxu0 0.0
  %102 = vmatpush.msra.mxu0 0.0
  %103 = vmatpush.msra.mxu0 0.0
  %104 = vmatpush.msra.mxu0 0.0
  %105 = vmatpush.msra.mxu0 0.0
  %106 = vmatpush.msra.mxu0 0.0
  %107 = vmatpush.msra.mxu0 0.0
  %108 = vmatpush.msra.mxu0 0.0
  %109 = vmatpush.msra.mxu0 %v48
  %110 = vmatpush.msra.mxu0 %v47
  %111 = vmatpush.msra.mxu0 %v46
  %112 = vmatpush.msra.mxu0 %v45
  %113 = vmatmul.f32.gmra.mxu0 %v95
  %v114 = vpop.f32.mrf.mxu0
  %v115 = vadd.f32 0.0, %v114
  %116 = vdwg.mxu0
  %v117 = vadd.f32 %v92, %v115
  %v118 = vxor.u32 %v117, 2147483648
  %v119 = vmul.f32 %v118, 1.442695
  %v120 = vpow.pop %v119
  %v121 = vadd.f32 %v120, 1.0
  %v122 = vrcp.pop %v121
  %v123 = vmul.f32 %v121, %v122
  %v124 = vsub.f32 1.0, %v123
  %v125 = vmul.f32 %v122, %v124
  %v126 = vadd.f32 %v122, %v125
  %vm127 = vweird.f32 %v121
  %vm128 = vweird.f32 %v122
  %vm129 = vmor %vm127, %vm128
  %v130 = vsel %vm129, %v122, %v126
  %v131 = vand.u32 2147483647, %v121
  %vm132 = vcmp.eq.f32.partialorder %v131, 8.507059e+37
  %v133 = vand.u32 %v121, 2147483648
  %v134 = vor.u32 1.1754944e-38, %v133
  %v135 = vsel %vm132, %v134, %v130
  %v136 = vmul.f32 1.0, %v135
  %v137 = vtanh.pop %v117
  %139 = vrot.lane.b32.xlu0 %v65, 32
  %v140 = vpop.permute.xlu0 %139
  %v142 = vmul.f32 %v136, %v140
  %144 = vrot.lane.b32.xlu0 %v137, 32
  %v145 = vpop.permute.xlu0 %144
  %v147 = vmul.f32 %v136, %v145
  %149 = vrot.lane.b32.xlu0 %v147, 32
  %v150 = vpop.permute.xlu0 %149
  %v152 = vadd.f32 %v142, %v150
  %v153 = vtanh.pop %v152
  %155 = vrot.lane.b32.xlu0 %v153, 32
  %v156 = vpop.permute.xlu0 %155
  %v158 = vmul.f32 %v136, %v156
  %v160 = vperm.slane %v55, 0
  %163 = vrot.lane.b32.xlu0 %v158, 64
  %v164 = vpop.permute.xlu0 %163
  %v165 = vsel %vm93, %v164, 0
  %167 = vmatpush.msra.mxu0 0.0
  %168 = vmatpush.msra.mxu0 0.0
  %169 = vmatpush.msra.mxu0 0.0
  %170 = vmatpush.msra.mxu0 0.0
  %171 = vmatpush.msra.mxu0 0.0
  %172 = vmatpush.msra.mxu0 0.0
  %173 = vmatpush.msra.mxu0 0.0
  %174 = vmatpush.msra.mxu0 0.0
  %175 = vmatpush.msra.mxu0 0.0
  %176 = vmatpush.msra.mxu0 0.0
  %177 = vmatpush.msra.mxu0 0.0
  %178 = vmatpush.msra.mxu0 0.0
  %179 = vmatpush.msra.mxu0 %v54
  %180 = vmatpush.msra.mxu0 %v53
  %181 = vmatpush.msra.mxu0 %v52
  %182 = vmatpush.msra.mxu0 %v51
  %183 = vmatmul.f32.gmra.mxu0 %v165
  %v184 = vpop.f32.mrf.mxu0
  %v185 = vadd.f32 %v160, %v184
  %186 = vdwg.mxu0
  %v187 = vmax.f32 %v185, 0.0
  %v188 = vld [vmem:[%s1] sm:$0x3f]
  %189 = vmatpush.msra.mxu0 0.0
  %190 = vmatpush.msra.mxu0 0.0
  %191 = vmatpush.msra.mxu0 0.0
  %192 = vmatpush.msra.mxu0 0.0
  %193 = vmatpush.msra.mxu0 0.0
  %194 = vmatpush.msra.mxu0 0.0
  %195 = vmatpush.msra.mxu0 0.0
  %196 = vmatpush.msra.mxu0 0.0
  %197 = vmatpush.msra.mxu0 0.0
  %198 = vmatpush.msra.mxu0 0.0
  %199 = vmatpush.msra.mxu0 0.0
  %200 = vmatpush.msra.mxu0 0.0
  %201 = vmatpush.msra.mxu0 %v59
  %202 = vmatpush.msra.mxu0 %v58
  %203 = vmatpush.msra.mxu0 %v57
  %204 = vmatpush.msra.mxu0 %v56
  %205 = vmatmul.f32.gmra.mxu0 %v165
  %v206 = vpop.f32.mrf.mxu0
  %v207 = vadd.f32 %v188, %v206
  %208 = vdwg.mxu0
  %209 = vmatpush.msra.mxu0 0.0
  %210 = vmatpush.msra.mxu0 0.0
  %211 = vmatpush.msra.mxu0 0.0
  %212 = vmatpush.msra.mxu0 0.0
  %213 = vmatpush.msra.mxu0 0.0
  %214 = vmatpush.msra.mxu0 0.0
  %215 = vmatpush.msra.mxu0 0.0
  %216 = vmatpush.msra.mxu0 0.0
  %217 = vmatpush.msra.mxu0 0.0
  %218 = vmatpush.msra.mxu0 0.0
  %219 = vmatpush.msra.mxu0 0.0
  %220 = vmatpush.msra.mxu0 0.0
  %221 = vmatpush.msra.mxu0 %v63
  %222 = vmatpush.msra.mxu0 %v62
  %223 = vmatpush.msra.mxu0 %v61
  %224 = vmatpush.msra.mxu0 %v60
  %225 = vmatmul.f32.gmra.mxu0 %v165
  %v226 = vpop.f32.mrf.mxu0
  %v227 = vadd.f32 0.0, %v226
  %228 = vdwg.mxu0
  %vm229 = vcmask 48128
  %v231 = vsel %vm229, %v44, 0
  %vm233 = vcmask 1045504
  %v235 = vsel %vm233, %v207, 0
  %237 = vmatpush.msra.mxu0 0.0
  %238 = vmatpush.msra.mxu0 0.0
  %239 = vmatpush.msra.mxu0 0.0
  %240 = vmatpush.msra.mxu0 0.0
  %241 = vmatpush.msra.mxu0 0.0
  %242 = vmatpush.msra.mxu0 0.0
  %243 = vmatpush.msra.mxu0 0.0
  %244 = vmatpush.msra.mxu0 0.0
  %245 = vmatpush.msra.mxu0 0.0
  %246 = vmatpush.msra.mxu0 0.0
  %247 = vmatpush.msra.mxu0 0.0
  %248 = vmatpush.msra.mxu0 0.0
  %249 = vmatpush.msra.mxu0 0.0
  %250 = vmatpush.msra.mxu0 0.0
  %251 = vmatpush.msra.mxu0 0.0
  %252 = vmatpush.msra.mxu0 %v235
  %253 = vmatmul.f32.gmra.mxu0 %v231
  %v254 = vpop.f32.mrf.mxu0
  %v255 = vadd.f32 %v227, %v254
  %256 = vdwg.mxu0
  %v257 = vld [vmem:[%s2] sm:$0x3f]
  %v258 = vadd.f32 %v255, %v257
  %259 = vrot.lane.b32.xlu0 %v158, 72
  %v260 = vpop.permute.xlu0 %259
  %263 = vrot.lane.b32.xlu0 %v152, 8
  %v264 = vpop.permute.xlu0 %263
  %vm266 = vcmask 64512
  %v267 = vsel %vm266, %v187, %v260
  %vm268 = vcmask 326656
  %v269 = vsel %vm268, %v267, %v264
  %vm270 = vcmask 588800
  %v271 = vsel %vm270, %v269, 0.0
  %272 = vst [vmem:[%s10] sm:$0x3f] %v271
  %s273 = scalar_lea.vmem %s0, 8
  %v274 = vld [vmem:[%s273] sm:$0x3f]
  %v276 = vsel %vm68, %v258, 0
  %278 = vmatpush.msra.mxu0 0.0
  %279 = vmatpush.msra.mxu0 0.0
  %280 = vmatpush.msra.mxu0 0.0
  %281 = vmatpush.msra.mxu0 0.0
  %282 = vmatpush.msra.mxu0 0.0
  %283 = vmatpush.msra.mxu0 0.0
  %284 = vmatpush.msra.mxu0 0.0
  %285 = vmatpush.msra.mxu0 0.0
  %286 = vmatpush.msra.mxu0 0.0
  %287 = vmatpush.msra.mxu0 0.0
  %288 = vmatpush.msra.mxu0 0.0
  %289 = vmatpush.msra.mxu0 0.0
  %290 = vmatpush.msra.mxu0 0.0
  %291 = vmatpush.msra.mxu0 0.0
  %292 = vmatpush.msra.mxu0 %v50
  %293 = vmatpush.msra.mxu0 %v49
  %294 = vmatmul.f32.gmra.mxu0 %v276
  %v295 = vpop.f32.mrf.mxu0
  %v296 = vadd.f32 0.0, %v295
  %297 = vdwg.mxu0
  %v298 = vadd.f32 %v274, %v296
  %299 = vmatpush.msra.mxu0 0.0
  %300 = vmatpush.msra.mxu0 0.0
  %301 = vmatpush.msra.mxu0 0.0
  %302 = vmatpush.msra.mxu0 0.0
  %303 = vmatpush.msra.mxu0 0.0
  %304 = vmatpush.msra.mxu0 0.0
  %305 = vmatpush.msra.mxu0 0.0
  %306 = vmatpush.msra.mxu0 0.0
  %307 = vmatpush.msra.mxu0 0.0
  %308 = vmatpush.msra.mxu0 0.0
  %309 = vmatpush.msra.mxu0 0.0
  %310 = vmatpush.msra.mxu0 0.0
  %311 = vmatpush.msra.mxu0 %v48
  %312 = vmatpush.msra.mxu0 %v47
  %313 = vmatpush.msra.mxu0 %v46
  %314 = vmatpush.msra.mxu0 %v45
  %315 = vmatmul.f32.gmra.mxu0 %v165
  %v316 = vpop.f32.mrf.mxu0
  %v317 = vadd.f32 0.0, %v316
  %318 = vdwg.mxu0
  %v319 = vadd.f32 %v298, %v317
  %v320 = vxor.u32 %v319, 2147483648
  %v321 = vmul.f32 %v320, 1.442695
  %v322 = vpow.pop %v321
  %v323 = vadd.f32 %v322, 1.0
  %v324 = vrcp.pop %v323
  %v325 = vmul.f32 %v323, %v324
  %v326 = vsub.f32 1.0, %v325
  %v327 = vmul.f32 %v324, %v326
  %v328 = vadd.f32 %v324, %v327
  %vm329 = vweird.f32 %v323
  %vm330 = vweird.f32 %v324
  %vm331 = vmor %vm329, %vm330
  %v332 = vsel %vm331, %v324, %v328
  %v333 = vand.u32 2147483647, %v323
  %vm334 = vcmp.eq.f32.partialorder %v333, 8.507059e+37
  %v335 = vand.u32 %v323, 2147483648
  %v336 = vor.u32 1.1754944e-38, %v335
  %v337 = vsel %vm334, %v336, %v332
  %v338 = vmul.f32 1.0, %v337
  %v339 = vtanh.pop %v319
  %v340 = vmul.f32 %v338, %v152
  %342 = vrot.lane.b32.xlu0 %v339, 32
  %v343 = vpop.permute.xlu0 %342
  %v345 = vmul.f32 %v338, %v343
  %347 = vrot.lane.b32.xlu0 %v345, 32
  %v348 = vpop.permute.xlu0 %347
  %v350 = vadd.f32 %v340, %v348
  %v351 = vtanh.pop %v350
  %353 = vrot.lane.b32.xlu0 %v351, 32
  %v354 = vpop.permute.xlu0 %353
  %v356 = vmul.f32 %v338, %v354
  %358 = vrot.lane.b32.xlu0 %v356, 64
  %v359 = vpop.permute.xlu0 %358
  %v360 = vsel %vm93, %v359, 0
  %362 = vmatpush.msra.mxu0 0.0
  %363 = vmatpush.msra.mxu0 0.0
  %364 = vmatpush.msra.mxu0 0.0
  %365 = vmatpush.msra.mxu0 0.0
  %366 = vmatpush.msra.mxu0 0.0
  %367 = vmatpush.msra.mxu0 0.0
  %368 = vmatpush.msra.mxu0 0.0
  %369 = vmatpush.msra.mxu0 0.0
  %370 = vmatpush.msra.mxu0 0.0
  %371 = vmatpush.msra.mxu0 0.0
  %372 = vmatpush.msra.mxu0 0.0
  %373 = vmatpush.msra.mxu0 0.0
  %374 = vmatpush.msra.mxu0 %v54
  %375 = vmatpush.msra.mxu0 %v53
  %376 = vmatpush.msra.mxu0 %v52
  %377 = vmatpush.msra.mxu0 %v51
  %378 = vmatmul.f32.gmra.mxu0 %v360
  %v379 = vpop.f32.mrf.mxu0
  %v380 = vadd.f32 %v160, %v379
  %381 = vdwg.mxu0
  %v382 = vmax.f32 %v380, 0.0
  %s383 = scalar_lea.vmem %s1, 8
  %v384 = vld [vmem:[%s383] sm:$0x3f]
  %385 = vmatpush.msra.mxu0 0.0
  %386 = vmatpush.msra.mxu0 0.0
  %387 = vmatpush.msra.mxu0 0.0
  %388 = vmatpush.msra.mxu0 0.0
  %389 = vmatpush.msra.mxu0 0.0
  %390 = vmatpush.msra.mxu0 0.0
  %391 = vmatpush.msra.mxu0 0.0
  %392 = vmatpush.msra.mxu0 0.0
  %393 = vmatpush.msra.mxu0 0.0
  %394 = vmatpush.msra.mxu0 0.0
  %395 = vmatpush.msra.mxu0 0.0
  %396 = vmatpush.msra.mxu0 0.0
  %397 = vmatpush.msra.mxu0 %v59
  %398 = vmatpush.msra.mxu0 %v58
  %399 = vmatpush.msra.mxu0 %v57
  %400 = vmatpush.msra.mxu0 %v56
  %401 = vmatmul.f32.gmra.mxu0 %v360
  %v402 = vpop.f32.mrf.mxu0
  %v403 = vadd.f32 %v384, %v402
  %404 = vdwg.mxu0
  %405 = vmatpush.msra.mxu0 0.0
  %406 = vmatpush.msra.mxu0 0.0
  %407 = vmatpush.msra.mxu0 0.0
  %408 = vmatpush.msra.mxu0 0.0
  %409 = vmatpush.msra.mxu0 0.0
  %410 = vmatpush.msra.mxu0 0.0
  %411 = vmatpush.msra.mxu0 0.0
  %412 = vmatpush.msra.mxu0 0.0
  %413 = vmatpush.msra.mxu0 0.0
  %414 = vmatpush.msra.mxu0 0.0
  %415 = vmatpush.msra.mxu0 0.0
  %416 = vmatpush.msra.mxu0 0.0
  %417 = vmatpush.msra.mxu0 %v63
  %418 = vmatpush.msra.mxu0 %v62
  %419 = vmatpush.msra.mxu0 %v61
  %420 = vmatpush.msra.mxu0 %v60
  %421 = vmatmul.f32.gmra.mxu0 %v360
  %v422 = vpop.f32.mrf.mxu0
  %v423 = vadd.f32 0.0, %v422
  %424 = vdwg.mxu0
  %v426 = vsel %vm233, %v403, 0
  %428 = vmatpush.msra.mxu0 0.0
  %429 = vmatpush.msra.mxu0 0.0
  %430 = vmatpush.msra.mxu0 0.0
  %431 = vmatpush.msra.mxu0 0.0
  %432 = vmatpush.msra.mxu0 0.0
  %433 = vmatpush.msra.mxu0 0.0
  %434 = vmatpush.msra.mxu0 0.0
  %435 = vmatpush.msra.mxu0 0.0
  %436 = vmatpush.msra.mxu0 0.0
  %437 = vmatpush.msra.mxu0 0.0
  %438 = vmatpush.msra.mxu0 0.0
  %439 = vmatpush.msra.mxu0 0.0
  %440 = vmatpush.msra.mxu0 0.0
  %441 = vmatpush.msra.mxu0 0.0
  %442 = vmatpush.msra.mxu0 0.0
  %443 = vmatpush.msra.mxu0 %v426
  %444 = vmatmul.f32.gmra.mxu0 %v231
  %v445 = vpop.f32.mrf.mxu0
  %v446 = vadd.f32 %v423, %v445
  %447 = vdwg.mxu0
  %s448 = scalar_lea.vmem %s2, 8
  %v449 = vld [vmem:[%s448] sm:$0x3f]
  %v450 = vadd.f32 %v446, %v449
  %451 = vrot.lane.b32.xlu0 %v356, 72
  %v452 = vpop.permute.xlu0 %451
  %455 = vrot.lane.b32.xlu0 %v350, 8
  %v456 = vpop.permute.xlu0 %455
  %v458 = vsel %vm266, %v382, %v452
  %v459 = vsel %vm268, %v458, %v456
  %v460 = vsel %vm270, %v459, 0.0
  %s461 = scalar_lea.vmem %s10, 8
  %462 = vst [vmem:[%s461] sm:$0x3f] %v460
  %s463 = scalar_lea.vmem %s0, 16
  %v464 = vld [vmem:[%s463] sm:$0x3f]
  %v466 = vsel %vm68, %v450, 0
  %468 = vmatpush.msra.mxu0 0.0
  %469 = vmatpush.msra.mxu0 0.0
  %470 = vmatpush.msra.mxu0 0.0
  %471 = vmatpush.msra.mxu0 0.0
  %472 = vmatpush.msra.mxu0 0.0
  %473 = vmatpush.msra.mxu0 0.0
  %474 = vmatpush.msra.mxu0 0.0
  %475 = vmatpush.msra.mxu0 0.0
  %476 = vmatpush.msra.mxu0 0.0
  %477 = vmatpush.msra.mxu0 0.0
  %478 = vmatpush.msra.mxu0 0.0
  %479 = vmatpush.msra.mxu0 0.0
  %480 = vmatpush.msra.mxu0 0.0
  %481 = vmatpush.msra.mxu0 0.0
  %482 = vmatpush.msra.mxu0 %v50
  %483 = vmatpush.msra.mxu0 %v49
  %484 = vmatmul.f32.gmra.mxu0 %v466
  %v485 = vpop.f32.mrf.mxu0
  %v486 = vadd.f32 0.0, %v485
  %487 = vdwg.mxu0
  %v488 = vadd.f32 %v464, %v486
  %489 = vmatpush.msra.mxu0 0.0
  %490 = vmatpush.msra.mxu0 0.0
  %491 = vmatpush.msra.mxu0 0.0
  %492 = vmatpush.msra.mxu0 0.0
  %493 = vmatpush.msra.mxu0 0.0
  %494 = vmatpush.msra.mxu0 0.0
  %495 = vmatpush.msra.mxu0 0.0
  %496 = vmatpush.msra.mxu0 0.0
  %497 = vmatpush.msra.mxu0 0.0
  %498 = vmatpush.msra.mxu0 0.0
  %499 = vmatpush.msra.mxu0 0.0
  %500 = vmatpush.msra.mxu0 0.0
  %501 = vmatpush.msra.mxu0 %v48
  %502 = vmatpush.msra.mxu0 %v47
  %503 = vmatpush.msra.mxu0 %v46
  %504 = vmatpush.msra.mxu0 %v45
  %505 = vmatmul.f32.gmra.mxu0 %v360
  %v506 = vpop.f32.mrf.mxu0
  %v507 = vadd.f32 0.0, %v506
  %508 = vdwg.mxu0
  %v509 = vadd.f32 %v488, %v507
  %v510 = vxor.u32 %v509, 2147483648
  %v511 = vmul.f32 %v510, 1.442695
  %v512 = vpow.pop %v511
  %v513 = vadd.f32 %v512, 1.0
  %v514 = vrcp.pop %v513
  %v515 = vmul.f32 %v513, %v514
  %v516 = vsub.f32 1.0, %v515
  %v517 = vmul.f32 %v514, %v516
  %v518 = vadd.f32 %v514, %v517
  %vm519 = vweird.f32 %v513
  %vm520 = vweird.f32 %v514
  %vm521 = vmor %vm519, %vm520
  %v522 = vsel %vm521, %v514, %v518
  %v523 = vand.u32 2147483647, %v513
  %vm524 = vcmp.eq.f32.partialorder %v523, 8.507059e+37
  %v525 = vand.u32 %v513, 2147483648
  %v526 = vor.u32 1.1754944e-38, %v525
  %v527 = vsel %vm524, %v526, %v522
  %v528 = vmul.f32 1.0, %v527
  %v529 = vtanh.pop %v509
  %v530 = vmul.f32 %v528, %v350
  %532 = vrot.lane.b32.xlu0 %v529, 32
  %v533 = vpop.permute.xlu0 %532
  %v535 = vmul.f32 %v528, %v533
  %537 = vrot.lane.b32.xlu0 %v535, 32
  %v538 = vpop.permute.xlu0 %537
  %v540 = vadd.f32 %v530, %v538
  %v541 = vtanh.pop %v540
  %543 = vrot.lane.b32.xlu0 %v541, 32
  %v544 = vpop.permute.xlu0 %543
  %v546 = vmul.f32 %v528, %v544
  %548 = vrot.lane.b32.xlu0 %v546, 64
  %v549 = vpop.permute.xlu0 %548
  %v550 = vsel %vm93, %v549, 0
  %552 = vmatpush.msra.mxu0 0.0
  %553 = vmatpush.msra.mxu0 0.0
  %554 = vmatpush.msra.mxu0 0.0
  %555 = vmatpush.msra.mxu0 0.0
  %556 = vmatpush.msra.mxu0 0.0
  %557 = vmatpush.msra.mxu0 0.0
  %558 = vmatpush.msra.mxu0 0.0
  %559 = vmatpush.msra.mxu0 0.0
  %560 = vmatpush.msra.mxu0 0.0
  %561 = vmatpush.msra.mxu0 0.0
  %562 = vmatpush.msra.mxu0 0.0
  %563 = vmatpush.msra.mxu0 0.0
  %564 = vmatpush.msra.mxu0 %v54
  %565 = vmatpush.msra.mxu0 %v53
  %566 = vmatpush.msra.mxu0 %v52
  %567 = vmatpush.msra.mxu0 %v51
  %568 = vmatmul.f32.gmra.mxu0 %v550
  %v569 = vpop.f32.mrf.mxu0
  %v570 = vadd.f32 %v160, %v569
  %571 = vdwg.mxu0
  %v572 = vmax.f32 %v570, 0.0
  %s573 = scalar_lea.vmem %s1, 16
  %v574 = vld [vmem:[%s573] sm:$0x3f]
  %575 = vmatpush.msra.mxu0 0.0
  %576 = vmatpush.msra.mxu0 0.0
  %577 = vmatpush.msra.mxu0 0.0
  %578 = vmatpush.msra.mxu0 0.0
  %579 = vmatpush.msra.mxu0 0.0
  %580 = vmatpush.msra.mxu0 0.0
  %581 = vmatpush.msra.mxu0 0.0
  %582 = vmatpush.msra.mxu0 0.0
  %583 = vmatpush.msra.mxu0 0.0
  %584 = vmatpush.msra.mxu0 0.0
  %585 = vmatpush.msra.mxu0 0.0
  %586 = vmatpush.msra.mxu0 0.0
  %587 = vmatpush.msra.mxu0 %v59
  %588 = vmatpush.msra.mxu0 %v58
  %589 = vmatpush.msra.mxu0 %v57
  %590 = vmatpush.msra.mxu0 %v56
  %591 = vmatmul.f32.gmra.mxu0 %v550
  %v592 = vpop.f32.mrf.mxu0
  %v593 = vadd.f32 %v574, %v592
  %594 = vdwg.mxu0
  %595 = vmatpush.msra.mxu0 0.0
  %596 = vmatpush.msra.mxu0 0.0
  %597 = vmatpush.msra.mxu0 0.0
  %598 = vmatpush.msra.mxu0 0.0
  %599 = vmatpush.msra.mxu0 0.0
  %600 = vmatpush.msra.mxu0 0.0
  %601 = vmatpush.msra.mxu0 0.0
  %602 = vmatpush.msra.mxu0 0.0
  %603 = vmatpush.msra.mxu0 0.0
  %604 = vmatpush.msra.mxu0 0.0
  %605 = vmatpush.msra.mxu0 0.0
  %606 = vmatpush.msra.mxu0 0.0
  %607 = vmatpush.msra.mxu0 %v63
  %608 = vmatpush.msra.mxu0 %v62
  %609 = vmatpush.msra.mxu0 %v61
  %610 = vmatpush.msra.mxu0 %v60
  %611 = vmatmul.f32.gmra.mxu0 %v550
  %v612 = vpop.f32.mrf.mxu0
  %v613 = vadd.f32 0.0, %v612
  %614 = vdwg.mxu0
  %v616 = vsel %vm233, %v593, 0
  %618 = vmatpush.msra.mxu0 0.0
  %619 = vmatpush.msra.mxu0 0.0
  %620 = vmatpush.msra.mxu0 0.0
  %621 = vmatpush.msra.mxu0 0.0
  %622 = vmatpush.msra.mxu0 0.0
  %623 = vmatpush.msra.mxu0 0.0
  %624 = vmatpush.msra.mxu0 0.0
  %625 = vmatpush.msra.mxu0 0.0
  %626 = vmatpush.msra.mxu0 0.0
  %627 = vmatpush.msra.mxu0 0.0
  %628 = vmatpush.msra.mxu0 0.0
  %629 = vmatpush.msra.mxu0 0.0
  %630 = vmatpush.msra.mxu0 0.0
  %631 = vmatpush.msra.mxu0 0.0
  %632 = vmatpush.msra.mxu0 0.0
  %633 = vmatpush.msra.mxu0 %v616
  %634 = vmatmul.f32.gmra.mxu0 %v231
  %v635 = vpop.f32.mrf.mxu0
  %v636 = vadd.f32 %v613, %v635
  %637 = vdwg.mxu0
  %s638 = scalar_lea.vmem %s2, 16
  %v639 = vld [vmem:[%s638] sm:$0x3f]
  %v640 = vadd.f32 %v636, %v639
  %641 = vrot.lane.b32.xlu0 %v546, 72
  %v642 = vpop.permute.xlu0 %641
  %645 = vrot.lane.b32.xlu0 %v540, 8
  %v646 = vpop.permute.xlu0 %645
  %v648 = vsel %vm266, %v572, %v642
  %v649 = vsel %vm268, %v648, %v646
  %v650 = vsel %vm270, %v649, 0.0
  %s651 = scalar_lea.vmem %s10, 16
  %652 = vst [vmem:[%s651] sm:$0x3f] %v650
  %s653 = scalar_lea.vmem %s0, 24
  %v654 = vld [vmem:[%s653] sm:$0x3f]
  %v656 = vsel %vm68, %v640, 0
  %658 = vmatpush.msra.mxu0 0.0
  %659 = vmatpush.msra.mxu0 0.0
  %660 = vmatpush.msra.mxu0 0.0
  %661 = vmatpush.msra.mxu0 0.0
  %662 = vmatpush.msra.mxu0 0.0
  %663 = vmatpush.msra.mxu0 0.0
  %664 = vmatpush.msra.mxu0 0.0
  %665 = vmatpush.msra.mxu0 0.0
  %666 = vmatpush.msra.mxu0 0.0
  %667 = vmatpush.msra.mxu0 0.0
  %668 = vmatpush.msra.mxu0 0.0
  %669 = vmatpush.msra.mxu0 0.0
  %670 = vmatpush.msra.mxu0 0.0
  %671 = vmatpush.msra.mxu0 0.0
  %672 = vmatpush.msra.mxu0 %v50
  %673 = vmatpush.msra.mxu0 %v49
  %674 = vmatmul.f32.gmra.mxu0 %v656
  %v675 = vpop.f32.mrf.mxu0
  %v676 = vadd.f32 0.0, %v675
  %677 = vdwg.mxu0
  %v678 = vadd.f32 %v654, %v676
  %679 = vmatpush.msra.mxu0 0.0
  %680 = vmatpush.msra.mxu0 0.0
  %681 = vmatpush.msra.mxu0 0.0
  %682 = vmatpush.msra.mxu0 0.0
  %683 = vmatpush.msra.mxu0 0.0
  %684 = vmatpush.msra.mxu0 0.0
  %685 = vmatpush.msra.mxu0 0.0
  %686 = vmatpush.msra.mxu0 0.0
  %687 = vmatpush.msra.mxu0 0.0
  %688 = vmatpush.msra.mxu0 0.0
  %689 = vmatpush.msra.mxu0 0.0
  %690 = vmatpush.msra.mxu0 0.0
  %691 = vmatpush.msra.mxu0 %v48
  %692 = vmatpush.msra.mxu0 %v47
  %693 = vmatpush.msra.mxu0 %v46
  %694 = vmatpush.msra.mxu0 %v45
  %695 = vmatmul.f32.gmra.mxu0 %v550
  %v696 = vpop.f32.mrf.mxu0
  %v697 = vadd.f32 0.0, %v696
  %698 = vdwg.mxu0
  %v699 = vadd.f32 %v678, %v697
  %v700 = vxor.u32 %v699, 2147483648
  %v701 = vmul.f32 %v700, 1.442695
  %v702 = vpow.pop %v701
  %v703 = vadd.f32 %v702, 1.0
  %v704 = vrcp.pop %v703
  %v705 = vmul.f32 %v703, %v704
  %v706 = vsub.f32 1.0, %v705
  %v707 = vmul.f32 %v704, %v706
  %v708 = vadd.f32 %v704, %v707
  %vm709 = vweird.f32 %v703
  %vm710 = vweird.f32 %v704
  %vm711 = vmor %vm709, %vm710
  %v712 = vsel %vm711, %v704, %v708
  %v713 = vand.u32 2147483647, %v703
  %vm714 = vcmp.eq.f32.partialorder %v713, 8.507059e+37
  %v715 = vand.u32 %v703, 2147483648
  %v716 = vor.u32 1.1754944e-38, %v715
  %v717 = vsel %vm714, %v716, %v712
  %v718 = vmul.f32 1.0, %v717
  %v719 = vtanh.pop %v699
  %v720 = vmul.f32 %v718, %v540
  %722 = vrot.lane.b32.xlu0 %v719, 32
  %v723 = vpop.permute.xlu0 %722
  %v725 = vmul.f32 %v718, %v723
  %727 = vrot.lane.b32.xlu0 %v725, 32
  %v728 = vpop.permute.xlu0 %727
  %v730 = vadd.f32 %v720, %v728
  %v731 = vtanh.pop %v730
  %733 = vrot.lane.b32.xlu0 %v731, 32
  %v734 = vpop.permute.xlu0 %733
  %v736 = vmul.f32 %v718, %v734
  %738 = vrot.lane.b32.xlu0 %v736, 64
  %v739 = vpop.permute.xlu0 %738
  %v740 = vsel %vm93, %v739, 0
  %742 = vmatpush.msra.mxu0 0.0
  %743 = vmatpush.msra.mxu0 0.0
  %744 = vmatpush.msra.mxu0 0.0
  %745 = vmatpush.msra.mxu0 0.0
  %746 = vmatpush.msra.mxu0 0.0
  %747 = vmatpush.msra.mxu0 0.0
  %748 = vmatpush.msra.mxu0 0.0
  %749 = vmatpush.msra.mxu0 0.0
  %750 = vmatpush.msra.mxu0 0.0
  %751 = vmatpush.msra.mxu0 0.0
  %752 = vmatpush.msra.mxu0 0.0
  %753 = vmatpush.msra.mxu0 0.0
  %754 = vmatpush.msra.mxu0 %v54
  %755 = vmatpush.msra.mxu0 %v53
  %756 = vmatpush.msra.mxu0 %v52
  %757 = vmatpush.msra.mxu0 %v51
  %758 = vmatmul.f32.gmra.mxu0 %v740
  %v759 = vpop.f32.mrf.mxu0
  %v760 = vadd.f32 %v160, %v759
  %761 = vdwg.mxu0
  %v762 = vmax.f32 %v760, 0.0
  %s763 = scalar_lea.vmem %s1, 24
  %v764 = vld [vmem:[%s763] sm:$0x3f]
  %765 = vmatpush.msra.mxu0 0.0
  %766 = vmatpush.msra.mxu0 0.0
  %767 = vmatpush.msra.mxu0 0.0
  %768 = vmatpush.msra.mxu0 0.0
  %769 = vmatpush.msra.mxu0 0.0
  %770 = vmatpush.msra.mxu0 0.0
  %771 = vmatpush.msra.mxu0 0.0
  %772 = vmatpush.msra.mxu0 0.0
  %773 = vmatpush.msra.mxu0 0.0
  %774 = vmatpush.msra.mxu0 0.0
  %775 = vmatpush.msra.mxu0 0.0
  %776 = vmatpush.msra.mxu0 0.0
  %777 = vmatpush.msra.mxu0 %v59
  %778 = vmatpush.msra.mxu0 %v58
  %779 = vmatpush.msra.mxu0 %v57
  %780 = vmatpush.msra.mxu0 %v56
  %781 = vmatmul.f32.gmra.mxu0 %v740
  %v782 = vpop.f32.mrf.mxu0
  %v783 = vadd.f32 %v764, %v782
  %784 = vdwg.mxu0
  %785 = vmatpush.msra.mxu0 0.0
  %786 = vmatpush.msra.mxu0 0.0
  %787 = vmatpush.msra.mxu0 0.0
  %788 = vmatpush.msra.mxu0 0.0
  %789 = vmatpush.msra.mxu0 0.0
  %790 = vmatpush.msra.mxu0 0.0
  %791 = vmatpush.msra.mxu0 0.0
  %792 = vmatpush.msra.mxu0 0.0
  %793 = vmatpush.msra.mxu0 0.0
  %794 = vmatpush.msra.mxu0 0.0
  %795 = vmatpush.msra.mxu0 0.0
  %796 = vmatpush.msra.mxu0 0.0
  %797 = vmatpush.msra.mxu0 %v63
  %798 = vmatpush.msra.mxu0 %v62
  %799 = vmatpush.msra.mxu0 %v61
  %800 = vmatpush.msra.mxu0 %v60
  %801 = vmatmul.f32.gmra.mxu0 %v740
  %v802 = vpop.f32.mrf.mxu0
  %v803 = vadd.f32 0.0, %v802
  %804 = vdwg.mxu0
  %v806 = vsel %vm233, %v783, 0
  %808 = vmatpush.msra.mxu0 0.0
  %809 = vmatpush.msra.mxu0 0.0
  %810 = vmatpush.msra.mxu0 0.0
  %811 = vmatpush.msra.mxu0 0.0
  %812 = vmatpush.msra.mxu0 0.0
  %813 = vmatpush.msra.mxu0 0.0
  %814 = vmatpush.msra.mxu0 0.0
  %815 = vmatpush.msra.mxu0 0.0
  %816 = vmatpush.msra.mxu0 0.0
  %817 = vmatpush.msra.mxu0 0.0
  %818 = vmatpush.msra.mxu0 0.0
  %819 = vmatpush.msra.mxu0 0.0
  %820 = vmatpush.msra.mxu0 0.0
  %821 = vmatpush.msra.mxu0 0.0
  %822 = vmatpush.msra.mxu0 0.0
  %823 = vmatpush.msra.mxu0 %v806
  %824 = vmatmul.f32.gmra.mxu0 %v231
  %v825 = vpop.f32.mrf.mxu0
  %v826 = vadd.f32 %v803, %v825
  %827 = vdwg.mxu0
  %s828 = scalar_lea.vmem %s2, 24
  %v829 = vld [vmem:[%s828] sm:$0x3f]
  %v830 = vadd.f32 %v826, %v829
  %831 = vrot.lane.b32.xlu0 %v736, 72
  %v832 = vpop.permute.xlu0 %831
  %835 = vrot.lane.b32.xlu0 %v730, 8
  %v836 = vpop.permute.xlu0 %835
  %v838 = vsel %vm266, %v762, %v832
  %v839 = vsel %vm268, %v838, %v836
  %v840 = vsel %vm270, %v839, 0.0
  %s841 = scalar_lea.vmem %s10, 24
  %842 = vst [vmem:[%s841] sm:$0x3f] %v840
  %vm844 = vcmask 259072
  %845 = vst.msk [vmem:[#allocation2] sm:$0x3f] %vm844, %v739
  %846 = vrot.lane.b32.xlu0 %v730, 96
  %v847 = vpop.permute.xlu0 %846
  %849 = vst.msk [vmem:[#allocation3] sm:$0x3f] %vm844, %v847
  %vm850 = vcmask 128000
  %851 = vst.msk [vmem:[#allocation4] sm:$0x3f] %vm850, %v830
  // Predicated region
  $region46: #{tpu_custom_call.1} parent=0 // pred_check
    _
  $region47: #{tpu_custom_call.1} parent=0 // pred_check_branch
    %853 = sbr.rel (0) target = $region49
  $region48: #{tpu_custom_call.1} parent=0 // pred_region
    _
  $region49: #{tpu_custom_call.1} parent=0 // pred_fallthru
    _
  // Predicated region
  $region50: #{tpu_custom_call.1} parent=0 // pred_check
    _
  $region51: #{tpu_custom_call.1} parent=0 // pred_check_branch
    %855 = sbr.rel (0) target = $region53
  $region52: #{tpu_custom_call.1} parent=0 // pred_region
    _
  $region53: #{tpu_custom_call.1} parent=0 // pred_fallthru
    _

</llo_original>
